<compile_context>
chip_gen: v5e
topology: v5e:2x2
jax: 0.10.0
libtpu: 0.0.40
codegen_flags: <defaults>
</compile_context>

<pallas_src>
import functools

import jax
import jax.numpy as jnp
from jax import lax
from jax.experimental import pallas as pl
from jax.experimental.pallas import tpu as pltpu


def _conv3d_kernel(x_ref, t_ref, o_ref, *, K, D_out, H_out, WC_out):
    """One batch element per grid step.

    x_ref : (1, D, H, W*C_in)              input, (w, c) folded into lanes
    t_ref : (K, K, W*C_in, W_out*C_out)    block-Toeplitz weights (kw absorbed)
    o_ref : (1, D_out, H_out, W_out*C_out) lane-dense output (896 = 7*128)
    """

    def body(d, carry):
        acc = jnp.zeros((H_out, WC_out), dtype=jnp.float32)
        for kd in range(K):
            slab = x_ref[0, d + kd]                    # (H, W*C_in), full lanes
            for kh in range(K):
                acc = acc + jnp.dot(slab[kh:kh + H_out, :], t_ref[kd, kh],
                                    preferred_element_type=jnp.float32)
        o_ref[0, d] = acc.astype(o_ref.dtype)
        return carry

    lax.fori_loop(0, D_out, body, 0)


@jax.jit
def conv3d_pallas(x_ncdhw, w_oidhw):
    """3D conv, stride=1, padding=0, dilation=1, groups=1, no bias.

    x_ncdhw : (N, C_in, D, H, W)
    w_oidhw : (C_out, C_in, Kd, Kh, Kw)   (square kernel: Kd == Kh == Kw)
    returns : (N, C_out, D_out, H_out, W_out)
    """
    N, C_in, D, H, W = x_ncdhw.shape
    C_out, _, K, _, _ = w_oidhw.shape
    D_out, H_out, W_out = D - K + 1, H - K + 1, W - K + 1
    WC_in = W * C_in
    WC_out = W_out * C_out

    # ---- layout plumbing (wrapper side, tiny) ------------------------------
    # input: NCDHW -> (N, D, H, W*C_in) with channels minor inside the lanes.
    x2 = jnp.transpose(x_ncdhw, (0, 2, 3, 4, 1)).reshape(N, D, H, WC_in)

    # block-Toeplitz weights: T[kd, kh, w*C_in + c, j*C_out + co]
    #   = W[co, c, kd, kh, w - j]   if 0 <= w - j < K, else 0.
    # This absorbs the kw window so the kernel needs zero lane manipulation.
    w_t = jnp.transpose(w_oidhw, (2, 3, 4, 1, 0))                # (kd,kh,kw,ci,co)
    off = jnp.arange(W)[:, None] - jnp.arange(W_out)[None, :]    # (W, W_out) = w - j
    valid = (off >= 0) & (off < K)
    t = w_t[:, :, jnp.clip(off, 0, K - 1), :, :]                 # (K,K,W,W_out,Ci,Co)
    t = jnp.where(valid[None, None, :, :, None, None], t, 0.0)
    t = jnp.transpose(t, (0, 1, 2, 4, 3, 5))                     # (K,K,W,Ci,W_out,Co)
    t = t.reshape(K, K, WC_in, WC_out)

    kernel = functools.partial(_conv3d_kernel, K=K, D_out=D_out,
                               H_out=H_out, WC_out=WC_out)

    out = pl.pallas_call(
        kernel,
        out_shape=jax.ShapeDtypeStruct((N, D_out, H_out, WC_out),
                                       x_ncdhw.dtype),
        grid_spec=pltpu.PrefetchScalarGridSpec(
            num_scalar_prefetch=0,
            grid=(N,),
            in_specs=[
                # one full batch element: (1, 16, 16, 48) ~ 128 KiB in VMEM
                pl.BlockSpec((1, D, H, WC_in), lambda n: (n, 0, 0, 0)),
                # full Toeplitz weights (~1.5 MiB), resident across the grid
                pl.BlockSpec((K, K, WC_in, WC_out), lambda n: (0, 0, 0, 0)),
            ],
            out_specs=pl.BlockSpec((1, D_out, H_out, WC_out),
                                   lambda n: (n, 0, 0, 0)),
        ),
        compiler_params=pltpu.CompilerParams(
            dimension_semantics=("parallel",)),
    )(x2, t)

    # back to PyTorch's NCDHW layout
    out = out.reshape(N, D_out, H_out, W_out, C_out)
    return jnp.transpose(out, (0, 4, 1, 2, 3))


if __name__ == "__main__":
    # Shapes consistent with the module: batch=2, in_channels=3,
    # out_channels=64, cubic spatial extent 16, kernel 3.
    N, C_in, C_out, S, K = 2, 3, 64, 16, 3

    key = jax.random.PRNGKey(0)
    kx, kw = jax.random.split(key)
    x = jax.random.normal(kx, (N, C_in, S, S, S), dtype=jnp.float32)
    # Deterministic weight init (Conv3d weight shape: (C_out, C_in, K, K, K)).
    fan_in = C_in * K * K * K
    bound = 1.0 / (fan_in ** 0.5)
    w = jax.random.uniform(kw, (C_out, C_in, K, K, K),
                           minval=-bound, maxval=bound, dtype=jnp.float32)

    out = conv3d_pallas(x, w)
    out = jax.block_until_ready(out)

    # Reference check against XLA's conv.
    ref = lax.conv_general_dilated(
        x, w, window_strides=(1, 1, 1), padding="VALID",
        dimension_numbers=("NCDHW", "OIDHW", "NCDHW"))
    assert out.shape == (N, C_out, S - K + 1, S - K + 1, S - K + 1), out.shape
    err = float(jnp.max(jnp.abs(out - ref)))
    assert err < 2e-4, err

    print("KERNEL_OK")
</pallas_src>

<mosaic_0001>
module attributes {stable_mosaic.version = 11 : i64} {
  func.func @_conv3d_kernel(%arg0: i32, %arg1: memref<1x16x16x48xf32, #tpu.memory_space<vmem>>, %arg2: memref<3x3x48x896xf32, #tpu.memory_space<vmem>>, %arg3: memref<1x14x14x896xf32, #tpu.memory_space<vmem>>) attributes {dimension_semantics = [#tpu.dimension_semantics<parallel>], iteration_bounds = array<i64: 2>, scalar_prefetch = 0 : i64, scratch_operands = 0 : i64, tpu.core_type = #tpu.core_type<tc>, window_params = [{transform_indices = @transform_0, window_bounds = array<i64: 1, 16, 16, 48>}, {pipeline_mode = #tpu.pipeline_mode<synchronous>, transform_indices = @transform_1, window_bounds = array<i64: 3, 3, 48, 896>}, {transform_indices = @transform_2, window_bounds = array<i64: 1, 14, 14, 896>}]} {
    %c0_i32 = arith.constant 0 : i32
    %c14_i32 = arith.constant 14 : i32
    %0 = arith.addi %c0_i32, %c14_i32 : i32
    %c1_i32 = arith.constant 1 : i32
    scf.for %arg4 = %c0_i32 to %0 step %c1_i32  : i32 {
      %cst = arith.constant 0.000000e+00 : f32
      %1 = vector.broadcast %cst : f32 to vector<14x896xf32>
      %c0_i32_1 = arith.constant 0 : i32
      %2 = arith.addi %arg4, %c0_i32_1 : i32
      %c0 = arith.constant 0 : index
      %3 = arith.index_cast %2 : i32 to index
      %c0_2 = arith.constant 0 : index
      %c0_3 = arith.constant 0 : index
      %4 = vector.load %arg1[%c0, %3, %c0_2, %c0_3] : memref<1x16x16x48xf32, #tpu.memory_space<vmem>>, vector<1x1x16x48xf32>
      %5 = vector.shape_cast %4 : vector<1x1x16x48xf32> to vector<16x48xf32>
      %6 = vector.extract_strided_slice %5 {offsets = [0, 0], sizes = [14, 48], strides = [1, 1]} : vector<16x48xf32> to vector<14x48xf32>
      %c0_4 = arith.constant 0 : index
      %c0_5 = arith.constant 0 : index
      %c0_6 = arith.constant 0 : index
      %c0_7 = arith.constant 0 : index
      %7 = vector.load %arg2[%c0_4, %c0_5, %c0_6, %c0_7] : memref<3x3x48x896xf32, #tpu.memory_space<vmem>>, vector<1x1x48x896xf32>
      %8 = vector.shape_cast %7 : vector<1x1x48x896xf32> to vector<48x896xf32>
      %cst_8 = arith.constant dense<0.000000e+00> : vector<14x896xf32>
      %9 = tpu.matmul %6, %8, %cst_8 {dimension_numbers = #tpu.dot_dimension_numbers<[1], [0], [0], [1], [0, 0, 1, 1], [], []>} : vector<14x48xf32>, vector<48x896xf32>, vector<14x896xf32> -> vector<14x896xf32>
      %10 = arith.addf %1, %9 : vector<14x896xf32>
      %11 = vector.extract_strided_slice %5 {offsets = [1, 0], sizes = [14, 48], strides = [1, 1]} : vector<16x48xf32> to vector<14x48xf32>
      %c0_9 = arith.constant 0 : index
      %c1 = arith.constant 1 : index
      %c0_10 = arith.constant 0 : index
      %c0_11 = arith.constant 0 : index
      %12 = vector.load %arg2[%c0_9, %c1, %c0_10, %c0_11] : memref<3x3x48x896xf32, #tpu.memory_space<vmem>>, vector<1x1x48x896xf32>
      %13 = vector.shape_cast %12 : vector<1x1x48x896xf32> to vector<48x896xf32>
      %cst_12 = arith.constant dense<0.000000e+00> : vector<14x896xf32>
      %14 = tpu.matmul %11, %13, %cst_12 {dimension_numbers = #tpu.dot_dimension_numbers<[1], [0], [0], [1], [0, 0, 1, 1], [], []>} : vector<14x48xf32>, vector<48x896xf32>, vector<14x896xf32> -> vector<14x896xf32>
      %15 = arith.addf %10, %14 : vector<14x896xf32>
      %16 = vector.extract_strided_slice %5 {offsets = [2, 0], sizes = [14, 48], strides = [1, 1]} : vector<16x48xf32> to vector<14x48xf32>
      %c0_13 = arith.constant 0 : index
      %c2 = arith.constant 2 : index
      %c0_14 = arith.constant 0 : index
      %c0_15 = arith.constant 0 : index
      %17 = vector.load %arg2[%c0_13, %c2, %c0_14, %c0_15] : memref<3x3x48x896xf32, #tpu.memory_space<vmem>>, vector<1x1x48x896xf32>
      %18 = vector.shape_cast %17 : vector<1x1x48x896xf32> to vector<48x896xf32>
      %cst_16 = arith.constant dense<0.000000e+00> : vector<14x896xf32>
      %19 = tpu.matmul %16, %18, %cst_16 {dimension_numbers = #tpu.dot_dimension_numbers<[1], [0], [0], [1], [0, 0, 1, 1], [], []>} : vector<14x48xf32>, vector<48x896xf32>, vector<14x896xf32> -> vector<14x896xf32>
      %20 = arith.addf %15, %19 : vector<14x896xf32>
      %c1_i32_17 = arith.constant 1 : i32
      %21 = arith.addi %arg4, %c1_i32_17 : i32
      %c0_18 = arith.constant 0 : index
      %22 = arith.index_cast %21 : i32 to index
      %c0_19 = arith.constant 0 : index
      %c0_20 = arith.constant 0 : index
      %23 = vector.load %arg1[%c0_18, %22, %c0_19, %c0_20] : memref<1x16x16x48xf32, #tpu.memory_space<vmem>>, vector<1x1x16x48xf32>
      %24 = vector.shape_cast %23 : vector<1x1x16x48xf32> to vector<16x48xf32>
      %25 = vector.extract_strided_slice %24 {offsets = [0, 0], sizes = [14, 48], strides = [1, 1]} : vector<16x48xf32> to vector<14x48xf32>
      %c1_21 = arith.constant 1 : index
      %c0_22 = arith.constant 0 : index
      %c0_23 = arith.constant 0 : index
      %c0_24 = arith.constant 0 : index
      %26 = vector.load %arg2[%c1_21, %c0_22, %c0_23, %c0_24] : memref<3x3x48x896xf32, #tpu.memory_space<vmem>>, vector<1x1x48x896xf32>
      %27 = vector.shape_cast %26 : vector<1x1x48x896xf32> to vector<48x896xf32>
      %cst_25 = arith.constant dense<0.000000e+00> : vector<14x896xf32>
      %28 = tpu.matmul %25, %27, %cst_25 {dimension_numbers = #tpu.dot_dimension_numbers<[1], [0], [0], [1], [0, 0, 1, 1], [], []>} : vector<14x48xf32>, vector<48x896xf32>, vector<14x896xf32> -> vector<14x896xf32>
      %29 = arith.addf %20, %28 : vector<14x896xf32>
      %30 = vector.extract_strided_slice %24 {offsets = [1, 0], sizes = [14, 48], strides = [1, 1]} : vector<16x48xf32> to vector<14x48xf32>
      %c1_26 = arith.constant 1 : index
      %c1_27 = arith.constant 1 : index
      %c0_28 = arith.constant 0 : index
      %c0_29 = arith.constant 0 : index
      %31 = vector.load %arg2[%c1_26, %c1_27, %c0_28, %c0_29] : memref<3x3x48x896xf32, #tpu.memory_space<vmem>>, vector<1x1x48x896xf32>
      %32 = vector.shape_cast %31 : vector<1x1x48x896xf32> to vector<48x896xf32>
      %cst_30 = arith.constant dense<0.000000e+00> : vector<14x896xf32>
      %33 = tpu.matmul %30, %32, %cst_30 {dimension_numbers = #tpu.dot_dimension_numbers<[1], [0], [0], [1], [0, 0, 1, 1], [], []>} : vector<14x48xf32>, vector<48x896xf32>, vector<14x896xf32> -> vector<14x896xf32>
      %34 = arith.addf %29, %33 : vector<14x896xf32>
      %35 = vector.extract_strided_slice %24 {offsets = [2, 0], sizes = [14, 48], strides = [1, 1]} : vector<16x48xf32> to vector<14x48xf32>
      %c1_31 = arith.constant 1 : index
      %c2_32 = arith.constant 2 : index
      %c0_33 = arith.constant 0 : index
      %c0_34 = arith.constant 0 : index
      %36 = vector.load %arg2[%c1_31, %c2_32, %c0_33, %c0_34] : memref<3x3x48x896xf32, #tpu.memory_space<vmem>>, vector<1x1x48x896xf32>
      %37 = vector.shape_cast %36 : vector<1x1x48x896xf32> to vector<48x896xf32>
      %cst_35 = arith.constant dense<0.000000e+00> : vector<14x896xf32>
      %38 = tpu.matmul %35, %37, %cst_35 {dimension_numbers = #tpu.dot_dimension_numbers<[1], [0], [0], [1], [0, 0, 1, 1], [], []>} : vector<14x48xf32>, vector<48x896xf32>, vector<14x896xf32> -> vector<14x896xf32>
      %39 = arith.addf %34, %38 : vector<14x896xf32>
      %c2_i32 = arith.constant 2 : i32
      %40 = arith.addi %arg4, %c2_i32 : i32
      %c0_36 = arith.constant 0 : index
      %41 = arith.index_cast %40 : i32 to index
      %c0_37 = arith.constant 0 : index
      %c0_38 = arith.constant 0 : index
      %42 = vector.load %arg1[%c0_36, %41, %c0_37, %c0_38] : memref<1x16x16x48xf32, #tpu.memory_space<vmem>>, vector<1x1x16x48xf32>
      %43 = vector.shape_cast %42 : vector<1x1x16x48xf32> to vector<16x48xf32>
      %44 = vector.extract_strided_slice %43 {offsets = [0, 0], sizes = [14, 48], strides = [1, 1]} : vector<16x48xf32> to vector<14x48xf32>
      %c2_39 = arith.constant 2 : index
      %c0_40 = arith.constant 0 : index
      %c0_41 = arith.constant 0 : index
      %c0_42 = arith.constant 0 : index
      %45 = vector.load %arg2[%c2_39, %c0_40, %c0_41, %c0_42] : memref<3x3x48x896xf32, #tpu.memory_space<vmem>>, vector<1x1x48x896xf32>
      %46 = vector.shape_cast %45 : vector<1x1x48x896xf32> to vector<48x896xf32>
      %cst_43 = arith.constant dense<0.000000e+00> : vector<14x896xf32>
      %47 = tpu.matmul %44, %46, %cst_43 {dimension_numbers = #tpu.dot_dimension_numbers<[1], [0], [0], [1], [0, 0, 1, 1], [], []>} : vector<14x48xf32>, vector<48x896xf32>, vector<14x896xf32> -> vector<14x896xf32>
      %48 = arith.addf %39, %47 : vector<14x896xf32>
      %49 = vector.extract_strided_slice %43 {offsets = [1, 0], sizes = [14, 48], strides = [1, 1]} : vector<16x48xf32> to vector<14x48xf32>
      %c2_44 = arith.constant 2 : index
      %c1_45 = arith.constant 1 : index
      %c0_46 = arith.constant 0 : index
      %c0_47 = arith.constant 0 : index
      %50 = vector.load %arg2[%c2_44, %c1_45, %c0_46, %c0_47] : memref<3x3x48x896xf32, #tpu.memory_space<vmem>>, vector<1x1x48x896xf32>
      %51 = vector.shape_cast %50 : vector<1x1x48x896xf32> to vector<48x896xf32>
      %cst_48 = arith.constant dense<0.000000e+00> : vector<14x896xf32>
      %52 = tpu.matmul %49, %51, %cst_48 {dimension_numbers = #tpu.dot_dimension_numbers<[1], [0], [0], [1], [0, 0, 1, 1], [], []>} : vector<14x48xf32>, vector<48x896xf32>, vector<14x896xf32> -> vector<14x896xf32>
      %53 = arith.addf %48, %52 : vector<14x896xf32>
      %54 = vector.extract_strided_slice %43 {offsets = [2, 0], sizes = [14, 48], strides = [1, 1]} : vector<16x48xf32> to vector<14x48xf32>
      %c2_49 = arith.constant 2 : index
      %c2_50 = arith.constant 2 : index
      %c0_51 = arith.constant 0 : index
      %c0_52 = arith.constant 0 : index
      %55 = vector.load %arg2[%c2_49, %c2_50, %c0_51, %c0_52] : memref<3x3x48x896xf32, #tpu.memory_space<vmem>>, vector<1x1x48x896xf32>
      %56 = vector.shape_cast %55 : vector<1x1x48x896xf32> to vector<48x896xf32>
      %cst_53 = arith.constant dense<0.000000e+00> : vector<14x896xf32>
      %57 = tpu.matmul %54, %56, %cst_53 {dimension_numbers = #tpu.dot_dimension_numbers<[1], [0], [0], [1], [0, 0, 1, 1], [], []>} : vector<14x48xf32>, vector<48x896xf32>, vector<14x896xf32> -> vector<14x896xf32>
      %58 = arith.addf %53, %57 : vector<14x896xf32>
      %c0_54 = arith.constant 0 : index
      %59 = arith.index_cast %arg4 : i32 to index
      %c0_55 = arith.constant 0 : index
      %c0_56 = arith.constant 0 : index
      %60 = vector.load %arg3[%c0_54, %59, %c0_55, %c0_56] : memref<1x14x14x896xf32, #tpu.memory_space<vmem>>, vector<1x1x14x896xf32>
      %61 = vector.shape_cast %60 : vector<1x1x14x896xf32> to vector<14x896xf32>
      %62 = vector.shape_cast %58 : vector<14x896xf32> to vector<1x1x14x896xf32>
      tpu.vector_store %arg3[%c0_54, %59, %c0_55, %c0_56], %62 {strides = array<i32>} : memref<1x14x14x896xf32, #tpu.memory_space<vmem>>, vector<1x1x14x896xf32>,
    }
    %c14_i32_0 = arith.constant 14 : i32
    return
  }
  func.func @transform_0(%arg0: i32) -> (i32, i32, i32, i32) {
    %c0_i32 = arith.constant 0 : i32
    %c0_i32_0 = arith.constant 0 : i32
    %c0_i32_1 = arith.constant 0 : i32
    %c0_i32_2 = arith.constant 0 : i32
    return %arg0, %c0_i32, %c0_i32_0, %c0_i32_1 : i32, i32, i32, i32
  }
  func.func @transform_1(%arg0: i32) -> (i32, i32, i32, i32) {
    %c0_i32 = arith.constant 0 : i32
    %c0_i32_0 = arith.constant 0 : i32
    %c0_i32_1 = arith.constant 0 : i32
    %c0_i32_2 = arith.constant 0 : i32
    %c0_i32_3 = arith.constant 0 : i32
    return %c0_i32, %c0_i32_0, %c0_i32_1, %c0_i32_2 : i32, i32, i32, i32
  }
  func.func @transform_2(%arg0: i32) -> (i32, i32, i32, i32) {
    %c0_i32 = arith.constant 0 : i32
    %c0_i32_0 = arith.constant 0 : i32
    %c0_i32_1 = arith.constant 0 : i32
    %c0_i32_2 = arith.constant 0 : i32
    return %arg0, %c0_i32, %c0_i32_0, %c0_i32_1 : i32, i32, i32, i32
  }
}

</mosaic_0001>

<llo_original>
// kernel: conv3d_pallas.1
$region0: #{conv3d_pallas.1}
  #allocation0 [shape = 'u32[]', space=smem, size = 0x4, offset = 0x4, fixed_abs, tag = 'smem constant byte address 0x4 - core index']
  #allocation1 [shape = 'u32[72,128]{1,0:T(1,128)}', space=vmem, size = 0x9000, scoped, tag = 'internal scratch']
  %s0 = inlined_call_operand.vmem [shape: f32[2,16,16,48], index: 0, kind: input, shape index: {}]
  %s1 = inlined_call_operand.vmem [shape: f32[3,3,48,896], index: 1, kind: input, shape index: {}]
  %s2 = inlined_call_operand.vmem [shape: f32[2,14,14,896], index: 2, kind: output, shape index: {}]
  %s3 = sld [smem:[#allocation0]]
  $region48: #{conv3d_pallas.1} parent=0
    _
  %s5 = ssub.s32 1, %s3
  %s6 = scalar_select 0, %s5, %s3
  loop: start=0, step=1, limit=4
  $region2: #{conv3d_pallas.1} parent=0 // loop_pre_header
    _
  $region3: #{conv3d_pallas.1} parent=0 // loop_header
    %s8 = sphi 0, %s12
    %p9 = scmp.ge.s32.totalorder %s8, 4
    %s18 = sphi 0, %s20
    %s21 = sphi 0, %s18
    %s22 = sphi 0, %s21
    %s38 = sphi 0, %s22
    %s42 = sphi 0, %s42
    %s44 = sphi 0, %s42
    %s45 = sphi 0, %s44
    %s59 = sphi 0, %s45
    %s65 = sphi 0, %s67
    %s68 = sphi 0, %s65
    %s69 = sphi 0, %s68
    %s85 = sphi 0, %s69
  $region4: #{conv3d_pallas.1} parent=0 // loop_header_branch
    %11 = sbr.rel (%p9) target = $region8
  $region5: #{conv3d_pallas.1} parent=0 // loop_body
    %s13 = ssub.s32 %s8, 1
    %s14 = ssub.s32 %s8, 2
    %s15 = sadd.s32 %s8, 1
    %s16 = ssub.s32 %s8, %s15
    %p17 = scmp.eq.s32.totalorder %s16, 0
    %s19 = sadd.s32 %s18, 1
    %s20 = scalar_select %p17, %s18, %s19
    %p23 = pneg %p17
    %p24 = scmp.eq.s32.totalorder %s8, 1
    %p25 = por %p23, %p24
    %p26 = scmp.ne.s32.totalorder %s18, %s21
    %p27 = scmp.eq.s32.totalorder %s8, 0
    %p28 = por %p26, %p27
    %p29 = scmp.ne.s32.totalorder %s18, %s21
    %p30 = scmp.eq.s32.totalorder %s13, 1
    %p31 = por %p29, %p30
    %p32 = scmp.ne.s32.totalorder %s21, %s22
    %p33 = scmp.eq.s32.totalorder %s13, 0
    %p34 = por %p32, %p33
    %p35 = scmp.ne.s32.totalorder %s21, %s22
    %p36 = scmp.eq.s32.totalorder %s14, 1
    %p37 = por %p35, %p36
    %p39 = scmp.ne.s32.totalorder %s22, %s38
    %p40 = scmp.eq.s32.totalorder %s14, 0
    %p41 = por %p39, %p40
    %s43 = sadd.s32 %s42, 1
    %p46 = scmp.eq.s32.totalorder %s8, 1
    %p47 = scmp.ne.s32.totalorder %s42, %s44
    %p48 = scmp.eq.s32.totalorder %s8, 0
    %p49 = por %p47, %p48
    %p50 = scmp.ne.s32.totalorder %s42, %s44
    %p51 = scmp.eq.s32.totalorder %s13, 1
    %p52 = por %p50, %p51
    %p53 = scmp.ne.s32.totalorder %s44, %s45
    %p54 = scmp.eq.s32.totalorder %s13, 0
    %p55 = por %p53, %p54
    %p56 = scmp.ne.s32.totalorder %s44, %s45
    %p57 = scmp.eq.s32.totalorder %s14, 1
    %p58 = por %p56, %p57
    %p60 = scmp.ne.s32.totalorder %s45, %s59
    %p61 = scmp.eq.s32.totalorder %s14, 0
    %p62 = por %p60, %p61
    %s63 = ssub.s32 %s8, %s15
    %p64 = scmp.eq.s32.totalorder %s63, 0
    %s66 = sadd.s32 %s65, 1
    %s67 = scalar_select %p64, %s65, %s66
    %p70 = pneg %p64
    %p71 = scmp.eq.s32.totalorder %s8, 1
    %p72 = por %p70, %p71
    %p73 = scmp.ne.s32.totalorder %s65, %s68
    %p74 = scmp.eq.s32.totalorder %s8, 0
    %p75 = por %p73, %p74
    %p76 = scmp.ne.s32.totalorder %s65, %s68
    %p77 = scmp.eq.s32.totalorder %s13, 1
    %p78 = por %p76, %p77
    %p79 = scmp.ne.s32.totalorder %s68, %s69
    %p80 = scmp.eq.s32.totalorder %s13, 0
    %p81 = por %p79, %p80
    %p82 = scmp.ne.s32.totalorder %s68, %s69
    %p83 = scmp.eq.s32.totalorder %s14, 1
    %p84 = por %p82, %p83
    %p86 = scmp.ne.s32.totalorder %s69, %s85
    %p87 = scmp.eq.s32.totalorder %s14, 0
    %p88 = por %p86, %p87
    %p89 = scmp.le.s32.totalorder 1, %s8
    %p90 = scmp.lt.s32.totalorder %s8, 3
    %p91 = pnand %p89, %p90
    %p92 = pneg %p91
    // Predicated region
    $region9: #{conv3d_pallas.1} parent=5 // pred_check
      _
    $region10: #{conv3d_pallas.1} parent=5 // pred_check_branch
      %94 = sbr.rel (%p91) target = $region12
    $region11: #{conv3d_pallas.1} parent=5 // pred_region
      %s95 = ssub.s32 %s8, 1
      // Predicated region
      $region13: #{conv3d_pallas.1} parent=11 // pred_check
        %p96 = pneg %p55
      $region14: #{conv3d_pallas.1} parent=11 // pred_check_branch
        %98 = sbr.rel (%p96) target = $region16
      $region15: #{conv3d_pallas.1} parent=11 // pred_region
        _
      $region16: #{conv3d_pallas.1} parent=11 // pred_fallthru
        _
    $region12: #{conv3d_pallas.1} parent=5 // pred_fallthru
      _
    %p99 = scmp.lt.s32.totalorder %s8, 2
    // Predicated region
    $region17: #{conv3d_pallas.1} parent=5 // pred_check
      %p100 = pneg %p99
    $region18: #{conv3d_pallas.1} parent=5 // pred_check_branch
      %102 = sbr.rel (%p100) target = $region20
    $region19: #{conv3d_pallas.1} parent=5 // pred_region
      // Predicated region
      $region21: #{conv3d_pallas.1} parent=19 // pred_check
        %p103 = pneg %p28
      $region22: #{conv3d_pallas.1} parent=19 // pred_check_branch
        %105 = sbr.rel (%p103) target = $region24
      $region23: #{conv3d_pallas.1} parent=19 // pred_region
        %p106 = scmp.lt.s32.totalorder %s8, 1
        %s107 = scalar_select %p106, %s8, 1
        %s108 = smul.addr %s107, 32
        %s109 = smul.addr %s108, 8
        %s110 = scalar_lea.vmem %s0, %s109
      $region24: #{conv3d_pallas.1} parent=19 // pred_fallthru
        _
    $region20: #{conv3d_pallas.1} parent=5 // pred_fallthru
      _
    %p111 = scmp.le.s32.totalorder 1, %s8
    %p112 = scmp.lt.s32.totalorder %s8, 3
    %p113 = pnand %p111, %p112
    %p114 = pneg %p113
    // Predicated region
    $region25: #{conv3d_pallas.1} parent=5 // pred_check
      _
    $region26: #{conv3d_pallas.1} parent=5 // pred_check_branch
      %116 = sbr.rel (%p113) target = $region28
    $region27: #{conv3d_pallas.1} parent=5 // pred_region
      %s117 = ssub.s32 %s8, 1
      %p118 = scmp.lt.s32.totalorder %s13, 1
      %s119 = scalar_select %p118, %s13, 1
      %s120 = smul.addr %s119, 32
      %s121 = smul.addr %s120, 8
      %s122 = scalar_lea.vmem %s0, %s121
      %p123 = pneg %p34
      %p124 = pneg %p31
      %p125 = pneg %p55
      %p126 = pneg %p52
      %p127 = pneg %p81
      %p128 = pneg %p78
      %p129 = scmp.lt.s32.totalorder %s13, 1
      %s130 = scalar_select %p129, %s13, 1
      %s131 = smul.addr %s130, 196
      %s132 = smul.addr %s131, 8
      %s133 = scalar_lea.vmem %s2, %s132
      %p134 = scmp.lt.s32.totalorder %s13, 1
      %s135 = scalar_select %p134, %s13, 1
      %s136 = smul.addr %s135, 32
      %s137 = smul.addr %s136, 8
      %s138 = scalar_lea.vmem %s0, %s137
      %p139 = scmp.lt.s32.totalorder %s13, 1
      %s140 = scalar_select %p139, %s13, 1
      %s141 = smul.addr %s140, 196
      %s142 = smul.addr %s141, 8
      %s143 = scalar_lea.vmem %s2, %s142
      loop: start=0, step=1, limit=14
      $region29: #{conv3d_pallas.1} parent=27 // loop_pre_header
        _
      $region30: #{conv3d_pallas.1} parent=27 // loop_header
        %s145 = sphi 0, %s149
        %p146 = scmp.ge.s32.totalorder %s145, 14
      $region31: #{conv3d_pallas.1} parent=27 // loop_header_branch
        %148 = sbr.rel (%p146) target = $region35
      $region32: #{conv3d_pallas.1} parent=27 // loop_body
        %s150 = smul.u32 %s145, 16
        %s151 = scalar_lea.vmem %s138, %s150
        %v152 = vld [vmem:[%s151] sm:$0xff]
        %v153 = vld [vmem:[%s151 + $0x8] sm:$0xff]
        %v154 = vld [vmem:[%s1] sm:$0xff]
        %v155 = vld [vmem:[%s1 + $0x8] sm:$0xff]
        %v156 = vld [vmem:[%s1 + $0x10] sm:$0xff]
        %v157 = vld [vmem:[%s1 + $0x18] sm:$0xff]
        %v158 = vld [vmem:[%s1 + $0x20] sm:$0xff]
        %v159 = vld [vmem:[%s1 + $0x28] sm:$0xff]
        %v160 = vld [vmem:[%s1 + $0x30] sm:$0xff]
        %v161 = vld [vmem:[%s1 + $0x38] sm:$0xff]
        %v162 = vld [vmem:[%s1 + $0x40] sm:$0xff]
        %v163 = vld [vmem:[%s1 + $0x48] sm:$0xff]
        %v164 = vld [vmem:[%s1 + $0x50] sm:$0xff]
        %v165 = vld [vmem:[%s1 + $0x58] sm:$0xff]
        %v166 = vld [vmem:[%s1 + $0x60] sm:$0xff]
        %v167 = vld [vmem:[%s1 + $0x68] sm:$0xff]
        %v168 = vld [vmem:[%s1 + $0x70] sm:$0xff]
        %v169 = vld [vmem:[%s1 + $0x78] sm:$0xff]
        %v170 = vld [vmem:[%s1 + $0x80] sm:$0xff]
        %v171 = vld [vmem:[%s1 + $0x88] sm:$0xff]
        %v172 = vld [vmem:[%s1 + $0x90] sm:$0xff]
        %v173 = vld [vmem:[%s1 + $0x98] sm:$0xff]
        %v174 = vld [vmem:[%s1 + $0xa0] sm:$0xff]
        %v175 = vld [vmem:[%s1 + $0xa8] sm:$0xff]
        %v176 = vld [vmem:[%s1 + $0xb0] sm:$0xff]
        %v177 = vld [vmem:[%s1 + $0xb8] sm:$0xff]
        %v178 = vld [vmem:[%s1 + $0xc0] sm:$0xff]
        %v179 = vld [vmem:[%s1 + $0xc8] sm:$0xff]
        %v180 = vld [vmem:[%s1 + $0xd0] sm:$0xff]
        %v181 = vld [vmem:[%s1 + $0xd8] sm:$0xff]
        %v182 = vld [vmem:[%s1 + $0xe0] sm:$0xff]
        %v183 = vld [vmem:[%s1 + $0xe8] sm:$0xff]
        %v184 = vld [vmem:[%s1 + $0xf0] sm:$0xff]
        %v185 = vld [vmem:[%s1 + $0xf8] sm:$0xff]
        %v186 = vld [vmem:[%s1 + $0x100] sm:$0xff]
        %v187 = vld [vmem:[%s1 + $0x108] sm:$0xff]
        %v188 = vld [vmem:[%s1 + $0x110] sm:$0xff]
        %v189 = vld [vmem:[%s1 + $0x118] sm:$0xff]
        %v190 = vld [vmem:[%s1 + $0x120] sm:$0xff]
        %v191 = vld [vmem:[%s1 + $0x128] sm:$0xff]
        %v192 = vld [vmem:[%s1 + $0x130] sm:$0xff]
        %v193 = vld [vmem:[%s1 + $0x138] sm:$0xff]
        %v194 = vld [vmem:[%s1 + $0x140] sm:$0xff]
        %v195 = vld [vmem:[%s1 + $0x148] sm:$0xff]
        %s196 = scalar_lea.vmem %s1, 336
        %v197 = vld [vmem:[%s196] sm:$0xff]
        %v198 = vld [vmem:[%s196 + $0x8] sm:$0xff]
        %v199 = vld [vmem:[%s196 + $0x10] sm:$0xff]
        %v200 = vld [vmem:[%s196 + $0x18] sm:$0xff]
        %v201 = vld [vmem:[%s196 + $0x20] sm:$0xff]
        %v202 = vld [vmem:[%s196 + $0x28] sm:$0xff]
        %v203 = vld [vmem:[%s196 + $0x30] sm:$0xff]
        %v204 = vld [vmem:[%s196 + $0x38] sm:$0xff]
        %v205 = vld [vmem:[%s196 + $0x40] sm:$0xff]
        %v206 = vld [vmem:[%s196 + $0x48] sm:$0xff]
        %v207 = vld [vmem:[%s196 + $0x50] sm:$0xff]
        %v208 = vld [vmem:[%s196 + $0x58] sm:$0xff]
        %v209 = vld [vmem:[%s196 + $0x60] sm:$0xff]
        %v210 = vld [vmem:[%s196 + $0x68] sm:$0xff]
        %v211 = vld [vmem:[%s196 + $0x70] sm:$0xff]
        %v212 = vld [vmem:[%s196 + $0x78] sm:$0xff]
        %v213 = vld [vmem:[%s196 + $0x80] sm:$0xff]
        %v214 = vld [vmem:[%s196 + $0x88] sm:$0xff]
        %v215 = vld [vmem:[%s196 + $0x90] sm:$0xff]
        %v216 = vld [vmem:[%s196 + $0x98] sm:$0xff]
        %v217 = vld [vmem:[%s196 + $0xa0] sm:$0xff]
        %v218 = vld [vmem:[%s196 + $0xa8] sm:$0xff]
        %v219 = vld [vmem:[%s196 + $0xb0] sm:$0xff]
        %v220 = vld [vmem:[%s196 + $0xb8] sm:$0xff]
        %v221 = vld [vmem:[%s196 + $0xc0] sm:$0xff]
        %v222 = vld [vmem:[%s196 + $0xc8] sm:$0xff]
        %v223 = vld [vmem:[%s196 + $0xd0] sm:$0xff]
        %v224 = vld [vmem:[%s196 + $0xd8] sm:$0xff]
        %v225 = vld [vmem:[%s196 + $0xe0] sm:$0xff]
        %v226 = vld [vmem:[%s196 + $0xe8] sm:$0xff]
        %v227 = vld [vmem:[%s196 + $0xf0] sm:$0xff]
        %v228 = vld [vmem:[%s196 + $0xf8] sm:$0xff]
        %v229 = vld [vmem:[%s196 + $0x100] sm:$0xff]
        %v230 = vld [vmem:[%s196 + $0x108] sm:$0xff]
        %v231 = vld [vmem:[%s196 + $0x110] sm:$0xff]
        %v232 = vld [vmem:[%s196 + $0x118] sm:$0xff]
        %v233 = vld [vmem:[%s196 + $0x120] sm:$0xff]
        %v234 = vld [vmem:[%s196 + $0x128] sm:$0xff]
        %v235 = vld [vmem:[%s196 + $0x130] sm:$0xff]
        %v236 = vld [vmem:[%s196 + $0x138] sm:$0xff]
        %v237 = vld [vmem:[%s196 + $0x140] sm:$0xff]
        %v238 = vld [vmem:[%s196 + $0x148] sm:$0xff]
        %vm241 = vcmask 1046528
        %v242 = vrot.slane %v152, 1
        %v243 = vrot.slane %v153, 1
        %v244 = vsel %vm241, %v242, %v243
        %vm245 = vcmask 392192
        %v246 = vsel %vm245, %v244, 0
        %v248 = vsel %vm245, %v243, 0
        %250 = vmatpush.msra.mxu0 0.0
        %251 = vmatpush.msra.mxu0 0.0
        %252 = vmatpush.msra.mxu0 0.0
        %253 = vmatpush.msra.mxu0 0.0
        %254 = vmatpush.msra.mxu0 0.0
        %255 = vmatpush.msra.mxu0 0.0
        %256 = vmatpush.msra.mxu0 0.0
        %257 = vmatpush.msra.mxu0 0.0
        %258 = vmatpush.msra.mxu0 0.0
        %259 = vmatpush.msra.mxu0 0.0
        %260 = vmatpush.msra.mxu0 %v232
        %261 = vmatpush.msra.mxu0 %v225
        %262 = vmatpush.msra.mxu0 %v218
        %263 = vmatpush.msra.mxu0 %v211
        %264 = vmatpush.msra.mxu0 %v204
        %265 = vmatpush.msra.mxu0 %v197
        %266 = vmatmul.f32.gmra.mxu0 %v246
        %v267 = vpop.f32.mrf.mxu0
        %v268 = vadd.f32 0.0, %v267
        %269 = vmatmul.f32.gmra.mxu0 %v248
        %v270 = vpop.f32.mrf.mxu0
        %v271 = vadd.f32 0.0, %v270
        %272 = vdwg.mxu0
        %273 = vmatpush.msra.mxu0 0.0
        %274 = vmatpush.msra.mxu0 0.0
        %275 = vmatpush.msra.mxu0 0.0
        %276 = vmatpush.msra.mxu0 0.0
        %277 = vmatpush.msra.mxu0 0.0
        %278 = vmatpush.msra.mxu0 0.0
        %279 = vmatpush.msra.mxu0 0.0
        %280 = vmatpush.msra.mxu0 0.0
        %281 = vmatpush.msra.mxu0 0.0
        %282 = vmatpush.msra.mxu0 0.0
        %283 = vmatpush.msra.mxu0 %v233
        %284 = vmatpush.msra.mxu0 %v226
        %285 = vmatpush.msra.mxu0 %v219
        %286 = vmatpush.msra.mxu0 %v212
        %287 = vmatpush.msra.mxu0 %v205
        %288 = vmatpush.msra.mxu0 %v198
        %289 = vmatmul.f32.gmra.mxu0 %v246
        %v290 = vpop.f32.mrf.mxu0
        %v291 = vadd.f32 0.0, %v290
        %292 = vmatmul.f32.gmra.mxu0 %v248
        %v293 = vpop.f32.mrf.mxu0
        %v294 = vadd.f32 0.0, %v293
        %295 = vdwg.mxu0
        %296 = vmatpush.msra.mxu0 0.0
        %297 = vmatpush.msra.mxu0 0.0
        %298 = vmatpush.msra.mxu0 0.0
        %299 = vmatpush.msra.mxu0 0.0
        %300 = vmatpush.msra.mxu0 0.0
        %301 = vmatpush.msra.mxu0 0.0
        %302 = vmatpush.msra.mxu0 0.0
        %303 = vmatpush.msra.mxu0 0.0
        %304 = vmatpush.msra.mxu0 0.0
        %305 = vmatpush.msra.mxu0 0.0
        %306 = vmatpush.msra.mxu0 %v234
        %307 = vmatpush.msra.mxu0 %v227
        %308 = vmatpush.msra.mxu0 %v220
        %309 = vmatpush.msra.mxu0 %v213
        %310 = vmatpush.msra.mxu0 %v206
        %311 = vmatpush.msra.mxu0 %v199
        %312 = vmatmul.f32.gmra.mxu0 %v246
        %v313 = vpop.f32.mrf.mxu0
        %v314 = vadd.f32 0.0, %v313
        %315 = vmatmul.f32.gmra.mxu0 %v248
        %v316 = vpop.f32.mrf.mxu0
        %v317 = vadd.f32 0.0, %v316
        %318 = vdwg.mxu0
        %319 = vmatpush.msra.mxu0 0.0
        %320 = vmatpush.msra.mxu0 0.0
        %321 = vmatpush.msra.mxu0 0.0
        %322 = vmatpush.msra.mxu0 0.0
        %323 = vmatpush.msra.mxu0 0.0
        %324 = vmatpush.msra.mxu0 0.0
        %325 = vmatpush.msra.mxu0 0.0
        %326 = vmatpush.msra.mxu0 0.0
        %327 = vmatpush.msra.mxu0 0.0
        %328 = vmatpush.msra.mxu0 0.0
        %329 = vmatpush.msra.mxu0 %v235
        %330 = vmatpush.msra.mxu0 %v228
        %331 = vmatpush.msra.mxu0 %v221
        %332 = vmatpush.msra.mxu0 %v214
        %333 = vmatpush.msra.mxu0 %v207
        %334 = vmatpush.msra.mxu0 %v200
        %335 = vmatmul.f32.gmra.mxu0 %v246
        %v336 = vpop.f32.mrf.mxu0
        %v337 = vadd.f32 0.0, %v336
        %338 = vmatmul.f32.gmra.mxu0 %v248
        %v339 = vpop.f32.mrf.mxu0
        %v340 = vadd.f32 0.0, %v339
        %341 = vdwg.mxu0
        %342 = vmatpush.msra.mxu0 0.0
        %343 = vmatpush.msra.mxu0 0.0
        %344 = vmatpush.msra.mxu0 0.0
        %345 = vmatpush.msra.mxu0 0.0
        %346 = vmatpush.msra.mxu0 0.0
        %347 = vmatpush.msra.mxu0 0.0
        %348 = vmatpush.msra.mxu0 0.0
        %349 = vmatpush.msra.mxu0 0.0
        %350 = vmatpush.msra.mxu0 0.0
        %351 = vmatpush.msra.mxu0 0.0
        %352 = vmatpush.msra.mxu0 %v236
        %353 = vmatpush.msra.mxu0 %v229
        %354 = vmatpush.msra.mxu0 %v222
        %355 = vmatpush.msra.mxu0 %v215
        %356 = vmatpush.msra.mxu0 %v208
        %357 = vmatpush.msra.mxu0 %v201
        %358 = vmatmul.f32.gmra.mxu0 %v246
        %v359 = vpop.f32.mrf.mxu0
        %v360 = vadd.f32 0.0, %v359
        %361 = vmatmul.f32.gmra.mxu0 %v248
        %v362 = vpop.f32.mrf.mxu0
        %v363 = vadd.f32 0.0, %v362
        %364 = vdwg.mxu0
        %365 = vmatpush.msra.mxu0 0.0
        %366 = vmatpush.msra.mxu0 0.0
        %367 = vmatpush.msra.mxu0 0.0
        %368 = vmatpush.msra.mxu0 0.0
        %369 = vmatpush.msra.mxu0 0.0
        %370 = vmatpush.msra.mxu0 0.0
        %371 = vmatpush.msra.mxu0 0.0
        %372 = vmatpush.msra.mxu0 0.0
        %373 = vmatpush.msra.mxu0 0.0
        %374 = vmatpush.msra.mxu0 0.0
        %375 = vmatpush.msra.mxu0 %v237
        %376 = vmatpush.msra.mxu0 %v230
        %377 = vmatpush.msra.mxu0 %v223
        %378 = vmatpush.msra.mxu0 %v216
        %379 = vmatpush.msra.mxu0 %v209
        %380 = vmatpush.msra.mxu0 %v202
        %381 = vmatmul.f32.gmra.mxu0 %v246
        %v382 = vpop.f32.mrf.mxu0
        %v383 = vadd.f32 0.0, %v382
        %384 = vmatmul.f32.gmra.mxu0 %v248
        %v385 = vpop.f32.mrf.mxu0
        %v386 = vadd.f32 0.0, %v385
        %387 = vdwg.mxu0
        %388 = vmatpush.msra.mxu0 0.0
        %389 = vmatpush.msra.mxu0 0.0
        %390 = vmatpush.msra.mxu0 0.0
        %391 = vmatpush.msra.mxu0 0.0
        %392 = vmatpush.msra.mxu0 0.0
        %393 = vmatpush.msra.mxu0 0.0
        %394 = vmatpush.msra.mxu0 0.0
        %395 = vmatpush.msra.mxu0 0.0
        %396 = vmatpush.msra.mxu0 0.0
        %397 = vmatpush.msra.mxu0 0.0
        %398 = vmatpush.msra.mxu0 %v238
        %399 = vmatpush.msra.mxu0 %v231
        %400 = vmatpush.msra.mxu0 %v224
        %401 = vmatpush.msra.mxu0 %v217
        %402 = vmatpush.msra.mxu0 %v210
        %403 = vmatpush.msra.mxu0 %v203
        %404 = vmatmul.f32.gmra.mxu0 %v246
        %v405 = vpop.f32.mrf.mxu0
        %v406 = vadd.f32 0.0, %v405
        %407 = vmatmul.f32.gmra.mxu0 %v248
        %v408 = vpop.f32.mrf.mxu0
        %v409 = vadd.f32 0.0, %v408
        %410 = vdwg.mxu0
        %v411 = vsel %vm245, %v152, 0
        %v413 = vsel %vm245, %v153, 0
        %415 = vmatpush.msra.mxu0 0.0
        %416 = vmatpush.msra.mxu0 0.0
        %417 = vmatpush.msra.mxu0 0.0
        %418 = vmatpush.msra.mxu0 0.0
        %419 = vmatpush.msra.mxu0 0.0
        %420 = vmatpush.msra.mxu0 0.0
        %421 = vmatpush.msra.mxu0 0.0
        %422 = vmatpush.msra.mxu0 0.0
        %423 = vmatpush.msra.mxu0 0.0
        %424 = vmatpush.msra.mxu0 0.0
        %425 = vmatpush.msra.mxu0 %v189
        %426 = vmatpush.msra.mxu0 %v182
        %427 = vmatpush.msra.mxu0 %v175
        %428 = vmatpush.msra.mxu0 %v168
        %429 = vmatpush.msra.mxu0 %v161
        %430 = vmatpush.msra.mxu0 %v154
        %431 = vmatmul.f32.gmra.mxu0 %v411
        %v432 = vpop.f32.mrf.mxu0
        %v433 = vadd.f32 %v268, %v432
        %434 = vmatmul.f32.gmra.mxu0 %v413
        %v435 = vpop.f32.mrf.mxu0
        %v436 = vadd.f32 %v271, %v435
        %437 = vdwg.mxu0
        %438 = vmatpush.msra.mxu0 0.0
        %439 = vmatpush.msra.mxu0 0.0
        %440 = vmatpush.msra.mxu0 0.0
        %441 = vmatpush.msra.mxu0 0.0
        %442 = vmatpush.msra.mxu0 0.0
        %443 = vmatpush.msra.mxu0 0.0
        %444 = vmatpush.msra.mxu0 0.0
        %445 = vmatpush.msra.mxu0 0.0
        %446 = vmatpush.msra.mxu0 0.0
        %447 = vmatpush.msra.mxu0 0.0
        %448 = vmatpush.msra.mxu0 %v190
        %449 = vmatpush.msra.mxu0 %v183
        %450 = vmatpush.msra.mxu0 %v176
        %451 = vmatpush.msra.mxu0 %v169
        %452 = vmatpush.msra.mxu0 %v162
        %453 = vmatpush.msra.mxu0 %v155
        %454 = vmatmul.f32.gmra.mxu0 %v411
        %v455 = vpop.f32.mrf.mxu0
        %v456 = vadd.f32 %v291, %v455
        %457 = vmatmul.f32.gmra.mxu0 %v413
        %v458 = vpop.f32.mrf.mxu0
        %v459 = vadd.f32 %v294, %v458
        %460 = vdwg.mxu0
        %461 = vmatpush.msra.mxu0 0.0
        %462 = vmatpush.msra.mxu0 0.0
        %463 = vmatpush.msra.mxu0 0.0
        %464 = vmatpush.msra.mxu0 0.0
        %465 = vmatpush.msra.mxu0 0.0
        %466 = vmatpush.msra.mxu0 0.0
        %467 = vmatpush.msra.mxu0 0.0
        %468 = vmatpush.msra.mxu0 0.0
        %469 = vmatpush.msra.mxu0 0.0
        %470 = vmatpush.msra.mxu0 0.0
        %471 = vmatpush.msra.mxu0 %v191
        %472 = vmatpush.msra.mxu0 %v184
        %473 = vmatpush.msra.mxu0 %v177
        %474 = vmatpush.msra.mxu0 %v170
        %475 = vmatpush.msra.mxu0 %v163
        %476 = vmatpush.msra.mxu0 %v156
        %477 = vmatmul.f32.gmra.mxu0 %v411
        %v478 = vpop.f32.mrf.mxu0
        %v479 = vadd.f32 %v314, %v478
        %480 = vmatmul.f32.gmra.mxu0 %v413
        %v481 = vpop.f32.mrf.mxu0
        %v482 = vadd.f32 %v317, %v481
        %483 = vdwg.mxu0
        %484 = vmatpush.msra.mxu0 0.0
        %485 = vmatpush.msra.mxu0 0.0
        %486 = vmatpush.msra.mxu0 0.0
        %487 = vmatpush.msra.mxu0 0.0
        %488 = vmatpush.msra.mxu0 0.0
        %489 = vmatpush.msra.mxu0 0.0
        %490 = vmatpush.msra.mxu0 0.0
        %491 = vmatpush.msra.mxu0 0.0
        %492 = vmatpush.msra.mxu0 0.0
        %493 = vmatpush.msra.mxu0 0.0
        %494 = vmatpush.msra.mxu0 %v192
        %495 = vmatpush.msra.mxu0 %v185
        %496 = vmatpush.msra.mxu0 %v178
        %497 = vmatpush.msra.mxu0 %v171
        %498 = vmatpush.msra.mxu0 %v164
        %499 = vmatpush.msra.mxu0 %v157
        %500 = vmatmul.f32.gmra.mxu0 %v411
        %v501 = vpop.f32.mrf.mxu0
        %v502 = vadd.f32 %v337, %v501
        %503 = vmatmul.f32.gmra.mxu0 %v413
        %v504 = vpop.f32.mrf.mxu0
        %v505 = vadd.f32 %v340, %v504
        %506 = vdwg.mxu0
        %507 = vmatpush.msra.mxu0 0.0
        %508 = vmatpush.msra.mxu0 0.0
        %509 = vmatpush.msra.mxu0 0.0
        %510 = vmatpush.msra.mxu0 0.0
        %511 = vmatpush.msra.mxu0 0.0
        %512 = vmatpush.msra.mxu0 0.0
        %513 = vmatpush.msra.mxu0 0.0
        %514 = vmatpush.msra.mxu0 0.0
        %515 = vmatpush.msra.mxu0 0.0
        %516 = vmatpush.msra.mxu0 0.0
        %517 = vmatpush.msra.mxu0 %v193
        %518 = vmatpush.msra.mxu0 %v186
        %519 = vmatpush.msra.mxu0 %v179
        %520 = vmatpush.msra.mxu0 %v172
        %521 = vmatpush.msra.mxu0 %v165
        %522 = vmatpush.msra.mxu0 %v158
        %523 = vmatmul.f32.gmra.mxu0 %v411
        %v524 = vpop.f32.mrf.mxu0
        %v525 = vadd.f32 %v360, %v524
        %526 = vmatmul.f32.gmra.mxu0 %v413
        %v527 = vpop.f32.mrf.mxu0
        %v528 = vadd.f32 %v363, %v527
        %529 = vdwg.mxu0
        %530 = vmatpush.msra.mxu0 0.0
        %531 = vmatpush.msra.mxu0 0.0
        %532 = vmatpush.msra.mxu0 0.0
        %533 = vmatpush.msra.mxu0 0.0
        %534 = vmatpush.msra.mxu0 0.0
        %535 = vmatpush.msra.mxu0 0.0
        %536 = vmatpush.msra.mxu0 0.0
        %537 = vmatpush.msra.mxu0 0.0
        %538 = vmatpush.msra.mxu0 0.0
        %539 = vmatpush.msra.mxu0 0.0
        %540 = vmatpush.msra.mxu0 %v194
        %541 = vmatpush.msra.mxu0 %v187
        %542 = vmatpush.msra.mxu0 %v180
        %543 = vmatpush.msra.mxu0 %v173
        %544 = vmatpush.msra.mxu0 %v166
        %545 = vmatpush.msra.mxu0 %v159
        %546 = vmatmul.f32.gmra.mxu0 %v411
        %v547 = vpop.f32.mrf.mxu0
        %v548 = vadd.f32 %v383, %v547
        %549 = vmatmul.f32.gmra.mxu0 %v413
        %v550 = vpop.f32.mrf.mxu0
        %v551 = vadd.f32 %v386, %v550
        %552 = vdwg.mxu0
        %553 = vmatpush.msra.mxu0 0.0
        %554 = vmatpush.msra.mxu0 0.0
        %555 = vmatpush.msra.mxu0 0.0
        %556 = vmatpush.msra.mxu0 0.0
        %557 = vmatpush.msra.mxu0 0.0
        %558 = vmatpush.msra.mxu0 0.0
        %559 = vmatpush.msra.mxu0 0.0
        %560 = vmatpush.msra.mxu0 0.0
        %561 = vmatpush.msra.mxu0 0.0
        %562 = vmatpush.msra.mxu0 0.0
        %563 = vmatpush.msra.mxu0 %v195
        %564 = vmatpush.msra.mxu0 %v188
        %565 = vmatpush.msra.mxu0 %v181
        %566 = vmatpush.msra.mxu0 %v174
        %567 = vmatpush.msra.mxu0 %v167
        %568 = vmatpush.msra.mxu0 %v160
        %569 = vmatmul.f32.gmra.mxu0 %v411
        %v570 = vpop.f32.mrf.mxu0
        %v571 = vadd.f32 %v406, %v570
        %572 = vmatmul.f32.gmra.mxu0 %v413
        %v573 = vpop.f32.mrf.mxu0
        %v574 = vadd.f32 %v409, %v573
        %575 = vdwg.mxu0
        %s576 = scalar_lea.vmem %s1, 672
        %v577 = vld [vmem:[%s576] sm:$0xff]
        %v578 = vld [vmem:[%s576 + $0x8] sm:$0xff]
        %v579 = vld [vmem:[%s576 + $0x10] sm:$0xff]
        %v580 = vld [vmem:[%s576 + $0x18] sm:$0xff]
        %v581 = vld [vmem:[%s576 + $0x20] sm:$0xff]
        %v582 = vld [vmem:[%s576 + $0x28] sm:$0xff]
        %v583 = vld [vmem:[%s576 + $0x30] sm:$0xff]
        %v584 = vld [vmem:[%s576 + $0x38] sm:$0xff]
        %v585 = vld [vmem:[%s576 + $0x40] sm:$0xff]
        %v586 = vld [vmem:[%s576 + $0x48] sm:$0xff]
        %v587 = vld [vmem:[%s576 + $0x50] sm:$0xff]
        %v588 = vld [vmem:[%s576 + $0x58] sm:$0xff]
        %v589 = vld [vmem:[%s576 + $0x60] sm:$0xff]
        %v590 = vld [vmem:[%s576 + $0x68] sm:$0xff]
        %v591 = vld [vmem:[%s576 + $0x70] sm:$0xff]
        %v592 = vld [vmem:[%s576 + $0x78] sm:$0xff]
        %v593 = vld [vmem:[%s576 + $0x80] sm:$0xff]
        %v594 = vld [vmem:[%s576 + $0x88] sm:$0xff]
        %v595 = vld [vmem:[%s576 + $0x90] sm:$0xff]
        %v596 = vld [vmem:[%s576 + $0x98] sm:$0xff]
        %v597 = vld [vmem:[%s576 + $0xa0] sm:$0xff]
        %v598 = vld [vmem:[%s576 + $0xa8] sm:$0xff]
        %v599 = vld [vmem:[%s576 + $0xb0] sm:$0xff]
        %v600 = vld [vmem:[%s576 + $0xb8] sm:$0xff]
        %v601 = vld [vmem:[%s576 + $0xc0] sm:$0xff]
        %v602 = vld [vmem:[%s576 + $0xc8] sm:$0xff]
        %v603 = vld [vmem:[%s576 + $0xd0] sm:$0xff]
        %v604 = vld [vmem:[%s576 + $0xd8] sm:$0xff]
        %v605 = vld [vmem:[%s576 + $0xe0] sm:$0xff]
        %v606 = vld [vmem:[%s576 + $0xe8] sm:$0xff]
        %v607 = vld [vmem:[%s576 + $0xf0] sm:$0xff]
        %v608 = vld [vmem:[%s576 + $0xf8] sm:$0xff]
        %v609 = vld [vmem:[%s576 + $0x100] sm:$0xff]
        %v610 = vld [vmem:[%s576 + $0x108] sm:$0xff]
        %v611 = vld [vmem:[%s576 + $0x110] sm:$0xff]
        %v612 = vld [vmem:[%s576 + $0x118] sm:$0xff]
        %v613 = vld [vmem:[%s576 + $0x120] sm:$0xff]
        %v614 = vld [vmem:[%s576 + $0x128] sm:$0xff]
        %v615 = vld [vmem:[%s576 + $0x130] sm:$0xff]
        %v616 = vld [vmem:[%s576 + $0x138] sm:$0xff]
        %v617 = vld [vmem:[%s576 + $0x140] sm:$0xff]
        %v618 = vld [vmem:[%s576 + $0x148] sm:$0xff]
        %vm619 = vcmask 1045504
        %v620 = vrot.slane %v152, 2
        %v621 = vrot.slane %v153, 2
        %v622 = vsel %vm619, %v620, %v621
        %v623 = vsel %vm245, %v622, 0
        %v625 = vsel %vm245, %v621, 0
        %627 = vmatpush.msra.mxu0 0.0
        %628 = vmatpush.msra.mxu0 0.0
        %629 = vmatpush.msra.mxu0 0.0
        %630 = vmatpush.msra.mxu0 0.0
        %631 = vmatpush.msra.mxu0 0.0
        %632 = vmatpush.msra.mxu0 0.0
        %633 = vmatpush.msra.mxu0 0.0
        %634 = vmatpush.msra.mxu0 0.0
        %635 = vmatpush.msra.mxu0 0.0
        %636 = vmatpush.msra.mxu0 0.0
        %637 = vmatpush.msra.mxu0 %v612
        %638 = vmatpush.msra.mxu0 %v605
        %639 = vmatpush.msra.mxu0 %v598
        %640 = vmatpush.msra.mxu0 %v591
        %641 = vmatpush.msra.mxu0 %v584
        %642 = vmatpush.msra.mxu0 %v577
        %643 = vmatmul.f32.gmra.mxu0 %v623
        %v644 = vpop.f32.mrf.mxu0
        %v645 = vadd.f32 0.0, %v644
        %646 = vmatmul.f32.gmra.mxu0 %v625
        %v647 = vpop.f32.mrf.mxu0
        %v648 = vadd.f32 0.0, %v647
        %649 = vdwg.mxu0
        %650 = vmatpush.msra.mxu0 0.0
        %651 = vmatpush.msra.mxu0 0.0
        %652 = vmatpush.msra.mxu0 0.0
        %653 = vmatpush.msra.mxu0 0.0
        %654 = vmatpush.msra.mxu0 0.0
        %655 = vmatpush.msra.mxu0 0.0
        %656 = vmatpush.msra.mxu0 0.0
        %657 = vmatpush.msra.mxu0 0.0
        %658 = vmatpush.msra.mxu0 0.0
        %659 = vmatpush.msra.mxu0 0.0
        %660 = vmatpush.msra.mxu0 %v613
        %661 = vmatpush.msra.mxu0 %v606
        %662 = vmatpush.msra.mxu0 %v599
        %663 = vmatpush.msra.mxu0 %v592
        %664 = vmatpush.msra.mxu0 %v585
        %665 = vmatpush.msra.mxu0 %v578
        %666 = vmatmul.f32.gmra.mxu0 %v623
        %v667 = vpop.f32.mrf.mxu0
        %v668 = vadd.f32 0.0, %v667
        %669 = vmatmul.f32.gmra.mxu0 %v625
        %v670 = vpop.f32.mrf.mxu0
        %v671 = vadd.f32 0.0, %v670
        %672 = vdwg.mxu0
        %673 = vmatpush.msra.mxu0 0.0
        %674 = vmatpush.msra.mxu0 0.0
        %675 = vmatpush.msra.mxu0 0.0
        %676 = vmatpush.msra.mxu0 0.0
        %677 = vmatpush.msra.mxu0 0.0
        %678 = vmatpush.msra.mxu0 0.0
        %679 = vmatpush.msra.mxu0 0.0
        %680 = vmatpush.msra.mxu0 0.0
        %681 = vmatpush.msra.mxu0 0.0
        %682 = vmatpush.msra.mxu0 0.0
        %683 = vmatpush.msra.mxu0 %v614
        %684 = vmatpush.msra.mxu0 %v607
        %685 = vmatpush.msra.mxu0 %v600
        %686 = vmatpush.msra.mxu0 %v593
        %687 = vmatpush.msra.mxu0 %v586
        %688 = vmatpush.msra.mxu0 %v579
        %689 = vmatmul.f32.gmra.mxu0 %v623
        %v690 = vpop.f32.mrf.mxu0
        %v691 = vadd.f32 0.0, %v690
        %692 = vmatmul.f32.gmra.mxu0 %v625
        %v693 = vpop.f32.mrf.mxu0
        %v694 = vadd.f32 0.0, %v693
        %695 = vdwg.mxu0
        %696 = vmatpush.msra.mxu0 0.0
        %697 = vmatpush.msra.mxu0 0.0
        %698 = vmatpush.msra.mxu0 0.0
        %699 = vmatpush.msra.mxu0 0.0
        %700 = vmatpush.msra.mxu0 0.0
        %701 = vmatpush.msra.mxu0 0.0
        %702 = vmatpush.msra.mxu0 0.0
        %703 = vmatpush.msra.mxu0 0.0
        %704 = vmatpush.msra.mxu0 0.0
        %705 = vmatpush.msra.mxu0 0.0
        %706 = vmatpush.msra.mxu0 %v615
        %707 = vmatpush.msra.mxu0 %v608
        %708 = vmatpush.msra.mxu0 %v601
        %709 = vmatpush.msra.mxu0 %v594
        %710 = vmatpush.msra.mxu0 %v587
        %711 = vmatpush.msra.mxu0 %v580
        %712 = vmatmul.f32.gmra.mxu0 %v623
        %v713 = vpop.f32.mrf.mxu0
        %v714 = vadd.f32 0.0, %v713
        %715 = vmatmul.f32.gmra.mxu0 %v625
        %v716 = vpop.f32.mrf.mxu0
        %v717 = vadd.f32 0.0, %v716
        %718 = vdwg.mxu0
        %719 = vmatpush.msra.mxu0 0.0
        %720 = vmatpush.msra.mxu0 0.0
        %721 = vmatpush.msra.mxu0 0.0
        %722 = vmatpush.msra.mxu0 0.0
        %723 = vmatpush.msra.mxu0 0.0
        %724 = vmatpush.msra.mxu0 0.0
        %725 = vmatpush.msra.mxu0 0.0
        %726 = vmatpush.msra.mxu0 0.0
        %727 = vmatpush.msra.mxu0 0.0
        %728 = vmatpush.msra.mxu0 0.0
        %729 = vmatpush.msra.mxu0 %v616
        %730 = vmatpush.msra.mxu0 %v609
        %731 = vmatpush.msra.mxu0 %v602
        %732 = vmatpush.msra.mxu0 %v595
        %733 = vmatpush.msra.mxu0 %v588
        %734 = vmatpush.msra.mxu0 %v581
        %735 = vmatmul.f32.gmra.mxu0 %v623
        %v736 = vpop.f32.mrf.mxu0
        %v737 = vadd.f32 0.0, %v736
        %738 = vmatmul.f32.gmra.mxu0 %v625
        %v739 = vpop.f32.mrf.mxu0
        %v740 = vadd.f32 0.0, %v739
        %741 = vdwg.mxu0
        %742 = vmatpush.msra.mxu0 0.0
        %743 = vmatpush.msra.mxu0 0.0
        %744 = vmatpush.msra.mxu0 0.0
        %745 = vmatpush.msra.mxu0 0.0
        %746 = vmatpush.msra.mxu0 0.0
        %747 = vmatpush.msra.mxu0 0.0
        %748 = vmatpush.msra.mxu0 0.0
        %749 = vmatpush.msra.mxu0 0.0
        %750 = vmatpush.msra.mxu0 0.0
        %751 = vmatpush.msra.mxu0 0.0
        %752 = vmatpush.msra.mxu0 %v617
        %753 = vmatpush.msra.mxu0 %v610
        %754 = vmatpush.msra.mxu0 %v603
        %755 = vmatpush.msra.mxu0 %v596
        %756 = vmatpush.msra.mxu0 %v589
        %757 = vmatpush.msra.mxu0 %v582
        %758 = vmatmul.f32.gmra.mxu0 %v623
        %v759 = vpop.f32.mrf.mxu0
        %v760 = vadd.f32 0.0, %v759
        %761 = vmatmul.f32.gmra.mxu0 %v625
        %v762 = vpop.f32.mrf.mxu0
        %v763 = vadd.f32 0.0, %v762
        %764 = vdwg.mxu0
        %765 = vmatpush.msra.mxu0 0.0
        %766 = vmatpush.msra.mxu0 0.0
        %767 = vmatpush.msra.mxu0 0.0
        %768 = vmatpush.msra.mxu0 0.0
        %769 = vmatpush.msra.mxu0 0.0
        %770 = vmatpush.msra.mxu0 0.0
        %771 = vmatpush.msra.mxu0 0.0
        %772 = vmatpush.msra.mxu0 0.0
        %773 = vmatpush.msra.mxu0 0.0
        %774 = vmatpush.msra.mxu0 0.0
        %775 = vmatpush.msra.mxu0 %v618
        %776 = vmatpush.msra.mxu0 %v611
        %777 = vmatpush.msra.mxu0 %v604
        %778 = vmatpush.msra.mxu0 %v597
        %779 = vmatpush.msra.mxu0 %v590
        %780 = vmatpush.msra.mxu0 %v583
        %781 = vmatmul.f32.gmra.mxu0 %v623
        %v782 = vpop.f32.mrf.mxu0
        %v783 = vadd.f32 0.0, %v782
        %784 = vmatmul.f32.gmra.mxu0 %v625
        %v785 = vpop.f32.mrf.mxu0
        %v786 = vadd.f32 0.0, %v785
        %787 = vdwg.mxu0
        %v788 = vadd.f32 %v433, %v645
        %v789 = vadd.f32 %v456, %v668
        %v790 = vadd.f32 %v479, %v691
        %v791 = vadd.f32 %v502, %v714
        %v792 = vadd.f32 %v525, %v737
        %v793 = vadd.f32 %v548, %v760
        %v794 = vadd.f32 %v571, %v783
        %v795 = vadd.f32 %v436, %v648
        %v796 = vadd.f32 %v459, %v671
        %v797 = vadd.f32 %v482, %v694
        %v798 = vadd.f32 %v505, %v717
        %v799 = vadd.f32 %v528, %v740
        %v800 = vadd.f32 %v551, %v763
        %v801 = vadd.f32 %v574, %v786
        %s802 = sadd.s32 %s145, 1
        %s803 = smul.u32 %s802, 16
        %s804 = scalar_lea.vmem %s138, %s803
        %v805 = vld [vmem:[%s804] sm:$0xff]
        %v806 = vld [vmem:[%s804 + $0x8] sm:$0xff]
        %s807 = scalar_lea.vmem %s1, 1008
        %v808 = vld [vmem:[%s807] sm:$0xff]
        %v809 = vld [vmem:[%s807 + $0x8] sm:$0xff]
        %v810 = vld [vmem:[%s807 + $0x10] sm:$0xff]
        %v811 = vld [vmem:[%s807 + $0x18] sm:$0xff]
        %v812 = vld [vmem:[%s807 + $0x20] sm:$0xff]
        %v813 = vld [vmem:[%s807 + $0x28] sm:$0xff]
        %v814 = vld [vmem:[%s807 + $0x30] sm:$0xff]
        %v815 = vld [vmem:[%s807 + $0x38] sm:$0xff]
        %v816 = vld [vmem:[%s807 + $0x40] sm:$0xff]
        %v817 = vld [vmem:[%s807 + $0x48] sm:$0xff]
        %v818 = vld [vmem:[%s807 + $0x50] sm:$0xff]
        %v819 = vld [vmem:[%s807 + $0x58] sm:$0xff]
        %v820 = vld [vmem:[%s807 + $0x60] sm:$0xff]
        %v821 = vld [vmem:[%s807 + $0x68] sm:$0xff]
        %v822 = vld [vmem:[%s807 + $0x70] sm:$0xff]
        %v823 = vld [vmem:[%s807 + $0x78] sm:$0xff]
        %v824 = vld [vmem:[%s807 + $0x80] sm:$0xff]
        %v825 = vld [vmem:[%s807 + $0x88] sm:$0xff]
        %v826 = vld [vmem:[%s807 + $0x90] sm:$0xff]
        %v827 = vld [vmem:[%s807 + $0x98] sm:$0xff]
        %v828 = vld [vmem:[%s807 + $0xa0] sm:$0xff]
        %v829 = vld [vmem:[%s807 + $0xa8] sm:$0xff]
        %v830 = vld [vmem:[%s807 + $0xb0] sm:$0xff]
        %v831 = vld [vmem:[%s807 + $0xb8] sm:$0xff]
        %v832 = vld [vmem:[%s807 + $0xc0] sm:$0xff]
        %v833 = vld [vmem:[%s807 + $0xc8] sm:$0xff]
        %v834 = vld [vmem:[%s807 + $0xd0] sm:$0xff]
        %v835 = vld [vmem:[%s807 + $0xd8] sm:$0xff]
        %v836 = vld [vmem:[%s807 + $0xe0] sm:$0xff]
        %v837 = vld [vmem:[%s807 + $0xe8] sm:$0xff]
        %v838 = vld [vmem:[%s807 + $0xf0] sm:$0xff]
        %v839 = vld [vmem:[%s807 + $0xf8] sm:$0xff]
        %v840 = vld [vmem:[%s807 + $0x100] sm:$0xff]
        %v841 = vld [vmem:[%s807 + $0x108] sm:$0xff]
        %v842 = vld [vmem:[%s807 + $0x110] sm:$0xff]
        %v843 = vld [vmem:[%s807 + $0x118] sm:$0xff]
        %v844 = vld [vmem:[%s807 + $0x120] sm:$0xff]
        %v845 = vld [vmem:[%s807 + $0x128] sm:$0xff]
        %v846 = vld [vmem:[%s807 + $0x130] sm:$0xff]
        %v847 = vld [vmem:[%s807 + $0x138] sm:$0xff]
        %v848 = vld [vmem:[%s807 + $0x140] sm:$0xff]
        %v849 = vld [vmem:[%s807 + $0x148] sm:$0xff]
        %v851 = vsel %vm245, %v805, 0
        %v854 = vsel %vm245, %v806, 0
        %856 = vmatpush.msra.mxu0 0.0
        %857 = vmatpush.msra.mxu0 0.0
        %858 = vmatpush.msra.mxu0 0.0
        %859 = vmatpush.msra.mxu0 0.0
        %860 = vmatpush.msra.mxu0 0.0
        %861 = vmatpush.msra.mxu0 0.0
        %862 = vmatpush.msra.mxu0 0.0
        %863 = vmatpush.msra.mxu0 0.0
        %864 = vmatpush.msra.mxu0 0.0
        %865 = vmatpush.msra.mxu0 0.0
        %866 = vmatpush.msra.mxu0 %v843
        %867 = vmatpush.msra.mxu0 %v836
        %868 = vmatpush.msra.mxu0 %v829
        %869 = vmatpush.msra.mxu0 %v822
        %870 = vmatpush.msra.mxu0 %v815
        %871 = vmatpush.msra.mxu0 %v808
        %872 = vmatmul.f32.gmra.mxu0 %v851
        %v873 = vpop.f32.mrf.mxu0
        %v874 = vadd.f32 0.0, %v873
        %875 = vmatmul.f32.gmra.mxu0 %v854
        %v876 = vpop.f32.mrf.mxu0
        %v877 = vadd.f32 0.0, %v876
        %878 = vdwg.mxu0
        %879 = vmatpush.msra.mxu0 0.0
        %880 = vmatpush.msra.mxu0 0.0
        %881 = vmatpush.msra.mxu0 0.0
        %882 = vmatpush.msra.mxu0 0.0
        %883 = vmatpush.msra.mxu0 0.0
        %884 = vmatpush.msra.mxu0 0.0
        %885 = vmatpush.msra.mxu0 0.0
        %886 = vmatpush.msra.mxu0 0.0
        %887 = vmatpush.msra.mxu0 0.0
        %888 = vmatpush.msra.mxu0 0.0
        %889 = vmatpush.msra.mxu0 %v844
        %890 = vmatpush.msra.mxu0 %v837
        %891 = vmatpush.msra.mxu0 %v830
        %892 = vmatpush.msra.mxu0 %v823
        %893 = vmatpush.msra.mxu0 %v816
        %894 = vmatpush.msra.mxu0 %v809
        %895 = vmatmul.f32.gmra.mxu0 %v851
        %v896 = vpop.f32.mrf.mxu0
        %v897 = vadd.f32 0.0, %v896
        %898 = vmatmul.f32.gmra.mxu0 %v854
        %v899 = vpop.f32.mrf.mxu0
        %v900 = vadd.f32 0.0, %v899
        %901 = vdwg.mxu0
        %902 = vmatpush.msra.mxu0 0.0
        %903 = vmatpush.msra.mxu0 0.0
        %904 = vmatpush.msra.mxu0 0.0
        %905 = vmatpush.msra.mxu0 0.0
        %906 = vmatpush.msra.mxu0 0.0
        %907 = vmatpush.msra.mxu0 0.0
        %908 = vmatpush.msra.mxu0 0.0
        %909 = vmatpush.msra.mxu0 0.0
        %910 = vmatpush.msra.mxu0 0.0
        %911 = vmatpush.msra.mxu0 0.0
        %912 = vmatpush.msra.mxu0 %v845
        %913 = vmatpush.msra.mxu0 %v838
        %914 = vmatpush.msra.mxu0 %v831
        %915 = vmatpush.msra.mxu0 %v824
        %916 = vmatpush.msra.mxu0 %v817
        %917 = vmatpush.msra.mxu0 %v810
        %918 = vmatmul.f32.gmra.mxu0 %v851
        %v919 = vpop.f32.mrf.mxu0
        %v920 = vadd.f32 0.0, %v919
        %921 = vmatmul.f32.gmra.mxu0 %v854
        %v922 = vpop.f32.mrf.mxu0
        %v923 = vadd.f32 0.0, %v922
        %924 = vdwg.mxu0
        %925 = vmatpush.msra.mxu0 0.0
        %926 = vmatpush.msra.mxu0 0.0
        %927 = vmatpush.msra.mxu0 0.0
        %928 = vmatpush.msra.mxu0 0.0
        %929 = vmatpush.msra.mxu0 0.0
        %930 = vmatpush.msra.mxu0 0.0
        %931 = vmatpush.msra.mxu0 0.0
        %932 = vmatpush.msra.mxu0 0.0
        %933 = vmatpush.msra.mxu0 0.0
        %934 = vmatpush.msra.mxu0 0.0
        %935 = vmatpush.msra.mxu0 %v846
        %936 = vmatpush.msra.mxu0 %v839
        %937 = vmatpush.msra.mxu0 %v832
        %938 = vmatpush.msra.mxu0 %v825
        %939 = vmatpush.msra.mxu0 %v818
        %940 = vmatpush.msra.mxu0 %v811
        %941 = vmatmul.f32.gmra.mxu0 %v851
        %v942 = vpop.f32.mrf.mxu0
        %v943 = vadd.f32 0.0, %v942
        %944 = vmatmul.f32.gmra.mxu0 %v854
        %v945 = vpop.f32.mrf.mxu0
        %v946 = vadd.f32 0.0, %v945
        %947 = vdwg.mxu0
        %948 = vmatpush.msra.mxu0 0.0
        %949 = vmatpush.msra.mxu0 0.0
        %950 = vmatpush.msra.mxu0 0.0
        %951 = vmatpush.msra.mxu0 0.0
        %952 = vmatpush.msra.mxu0 0.0
        %953 = vmatpush.msra.mxu0 0.0
        %954 = vmatpush.msra.mxu0 0.0
        %955 = vmatpush.msra.mxu0 0.0
        %956 = vmatpush.msra.mxu0 0.0
        %957 = vmatpush.msra.mxu0 0.0
        %958 = vmatpush.msra.mxu0 %v847
        %959 = vmatpush.msra.mxu0 %v840
        %960 = vmatpush.msra.mxu0 %v833
        %961 = vmatpush.msra.mxu0 %v826
        %962 = vmatpush.msra.mxu0 %v819
        %963 = vmatpush.msra.mxu0 %v812
        %964 = vmatmul.f32.gmra.mxu0 %v851
        %v965 = vpop.f32.mrf.mxu0
        %v966 = vadd.f32 0.0, %v965
        %967 = vmatmul.f32.gmra.mxu0 %v854
        %v968 = vpop.f32.mrf.mxu0
        %v969 = vadd.f32 0.0, %v968
        %970 = vdwg.mxu0
        %971 = vmatpush.msra.mxu0 0.0
        %972 = vmatpush.msra.mxu0 0.0
        %973 = vmatpush.msra.mxu0 0.0
        %974 = vmatpush.msra.mxu0 0.0
        %975 = vmatpush.msra.mxu0 0.0
        %976 = vmatpush.msra.mxu0 0.0
        %977 = vmatpush.msra.mxu0 0.0
        %978 = vmatpush.msra.mxu0 0.0
        %979 = vmatpush.msra.mxu0 0.0
        %980 = vmatpush.msra.mxu0 0.0
        %981 = vmatpush.msra.mxu0 %v848
        %982 = vmatpush.msra.mxu0 %v841
        %983 = vmatpush.msra.mxu0 %v834
        %984 = vmatpush.msra.mxu0 %v827
        %985 = vmatpush.msra.mxu0 %v820
        %986 = vmatpush.msra.mxu0 %v813
        %987 = vmatmul.f32.gmra.mxu0 %v851
        %v988 = vpop.f32.mrf.mxu0
        %v989 = vadd.f32 0.0, %v988
        %990 = vmatmul.f32.gmra.mxu0 %v854
        %v991 = vpop.f32.mrf.mxu0
        %v992 = vadd.f32 0.0, %v991
        %993 = vdwg.mxu0
        %994 = vmatpush.msra.mxu0 0.0
        %995 = vmatpush.msra.mxu0 0.0
        %996 = vmatpush.msra.mxu0 0.0
        %997 = vmatpush.msra.mxu0 0.0
        %998 = vmatpush.msra.mxu0 0.0
        %999 = vmatpush.msra.mxu0 0.0
        %1000 = vmatpush.msra.mxu0 0.0
        %1001 = vmatpush.msra.mxu0 0.0
        %1002 = vmatpush.msra.mxu0 0.0
        %1003 = vmatpush.msra.mxu0 0.0
        %1004 = vmatpush.msra.mxu0 %v849
        %1005 = vmatpush.msra.mxu0 %v842
        %1006 = vmatpush.msra.mxu0 %v835
        %1007 = vmatpush.msra.mxu0 %v828
        %1008 = vmatpush.msra.mxu0 %v821
        %1009 = vmatpush.msra.mxu0 %v814
        %1010 = vmatmul.f32.gmra.mxu0 %v851
        %v1011 = vpop.f32.mrf.mxu0
        %v1012 = vadd.f32 0.0, %v1011
        %1013 = vmatmul.f32.gmra.mxu0 %v854
        %v1014 = vpop.f32.mrf.mxu0
        %v1015 = vadd.f32 0.0, %v1014
        %1016 = vdwg.mxu0
        %v1017 = vadd.f32 %v788, %v874
        %v1018 = vadd.f32 %v789, %v897
        %v1019 = vadd.f32 %v790, %v920
        %v1020 = vadd.f32 %v791, %v943
        %v1021 = vadd.f32 %v792, %v966
        %v1022 = vadd.f32 %v793, %v989
        %v1023 = vadd.f32 %v794, %v1012
        %v1024 = vadd.f32 %v795, %v877
        %v1025 = vadd.f32 %v796, %v900
        %v1026 = vadd.f32 %v797, %v923
        %v1027 = vadd.f32 %v798, %v946
        %v1028 = vadd.f32 %v799, %v969
        %v1029 = vadd.f32 %v800, %v992
        %v1030 = vadd.f32 %v801, %v1015
        %s1031 = scalar_lea.vmem %s1, 1344
        %v1032 = vld [vmem:[%s1031] sm:$0xff]
        %v1033 = vld [vmem:[%s1031 + $0x8] sm:$0xff]
        %v1034 = vld [vmem:[%s1031 + $0x10] sm:$0xff]
        %v1035 = vld [vmem:[%s1031 + $0x18] sm:$0xff]
        %v1036 = vld [vmem:[%s1031 + $0x20] sm:$0xff]
        %v1037 = vld [vmem:[%s1031 + $0x28] sm:$0xff]
        %v1038 = vld [vmem:[%s1031 + $0x30] sm:$0xff]
        %v1039 = vld [vmem:[%s1031 + $0x38] sm:$0xff]
        %v1040 = vld [vmem:[%s1031 + $0x40] sm:$0xff]
        %v1041 = vld [vmem:[%s1031 + $0x48] sm:$0xff]
        %v1042 = vld [vmem:[%s1031 + $0x50] sm:$0xff]
        %v1043 = vld [vmem:[%s1031 + $0x58] sm:$0xff]
        %v1044 = vld [vmem:[%s1031 + $0x60] sm:$0xff]
        %v1045 = vld [vmem:[%s1031 + $0x68] sm:$0xff]
        %v1046 = vld [vmem:[%s1031 + $0x70] sm:$0xff]
        %v1047 = vld [vmem:[%s1031 + $0x78] sm:$0xff]
        %v1048 = vld [vmem:[%s1031 + $0x80] sm:$0xff]
        %v1049 = vld [vmem:[%s1031 + $0x88] sm:$0xff]
        %v1050 = vld [vmem:[%s1031 + $0x90] sm:$0xff]
        %v1051 = vld [vmem:[%s1031 + $0x98] sm:$0xff]
        %v1052 = vld [vmem:[%s1031 + $0xa0] sm:$0xff]
        %v1053 = vld [vmem:[%s1031 + $0xa8] sm:$0xff]
        %v1054 = vld [vmem:[%s1031 + $0xb0] sm:$0xff]
        %v1055 = vld [vmem:[%s1031 + $0xb8] sm:$0xff]
        %v1056 = vld [vmem:[%s1031 + $0xc0] sm:$0xff]
        %v1057 = vld [vmem:[%s1031 + $0xc8] sm:$0xff]
        %v1058 = vld [vmem:[%s1031 + $0xd0] sm:$0xff]
        %v1059 = vld [vmem:[%s1031 + $0xd8] sm:$0xff]
        %v1060 = vld [vmem:[%s1031 + $0xe0] sm:$0xff]
        %v1061 = vld [vmem:[%s1031 + $0xe8] sm:$0xff]
        %v1062 = vld [vmem:[%s1031 + $0xf0] sm:$0xff]
        %v1063 = vld [vmem:[%s1031 + $0xf8] sm:$0xff]
        %v1064 = vld [vmem:[%s1031 + $0x100] sm:$0xff]
        %v1065 = vld [vmem:[%s1031 + $0x108] sm:$0xff]
        %v1066 = vld [vmem:[%s1031 + $0x110] sm:$0xff]
        %v1067 = vld [vmem:[%s1031 + $0x118] sm:$0xff]
        %v1068 = vld [vmem:[%s1031 + $0x120] sm:$0xff]
        %v1069 = vld [vmem:[%s1031 + $0x128] sm:$0xff]
        %v1070 = vld [vmem:[%s1031 + $0x130] sm:$0xff]
        %v1071 = vld [vmem:[%s1031 + $0x138] sm:$0xff]
        %v1072 = vld [vmem:[%s1031 + $0x140] sm:$0xff]
        %v1073 = vld [vmem:[%s1031 + $0x148] sm:$0xff]
        %v1074 = vrot.slane %v805, 1
        %v1075 = vrot.slane %v806, 1
        %v1076 = vsel %vm241, %v1074, %v1075
        %v1077 = vsel %vm245, %v1076, 0
        %v1079 = vsel %vm245, %v1075, 0
        %1081 = vmatpush.msra.mxu0 0.0
        %1082 = vmatpush.msra.mxu0 0.0
        %1083 = vmatpush.msra.mxu0 0.0
        %1084 = vmatpush.msra.mxu0 0.0
        %1085 = vmatpush.msra.mxu0 0.0
        %1086 = vmatpush.msra.mxu0 0.0
        %1087 = vmatpush.msra.mxu0 0.0
        %1088 = vmatpush.msra.mxu0 0.0
        %1089 = vmatpush.msra.mxu0 0.0
        %1090 = vmatpush.msra.mxu0 0.0
        %1091 = vmatpush.msra.mxu0 %v1067
        %1092 = vmatpush.msra.mxu0 %v1060
        %1093 = vmatpush.msra.mxu0 %v1053
        %1094 = vmatpush.msra.mxu0 %v1046
        %1095 = vmatpush.msra.mxu0 %v1039
        %1096 = vmatpush.msra.mxu0 %v1032
        %1097 = vmatmul.f32.gmra.mxu0 %v1077
        %v1098 = vpop.f32.mrf.mxu0
        %v1099 = vadd.f32 0.0, %v1098
        %1100 = vmatmul.f32.gmra.mxu0 %v1079
        %v1101 = vpop.f32.mrf.mxu0
        %v1102 = vadd.f32 0.0, %v1101
        %1103 = vdwg.mxu0
        %1104 = vmatpush.msra.mxu0 0.0
        %1105 = vmatpush.msra.mxu0 0.0
        %1106 = vmatpush.msra.mxu0 0.0
        %1107 = vmatpush.msra.mxu0 0.0
        %1108 = vmatpush.msra.mxu0 0.0
        %1109 = vmatpush.msra.mxu0 0.0
        %1110 = vmatpush.msra.mxu0 0.0
        %1111 = vmatpush.msra.mxu0 0.0
        %1112 = vmatpush.msra.mxu0 0.0
        %1113 = vmatpush.msra.mxu0 0.0
        %1114 = vmatpush.msra.mxu0 %v1068
        %1115 = vmatpush.msra.mxu0 %v1061
        %1116 = vmatpush.msra.mxu0 %v1054
        %1117 = vmatpush.msra.mxu0 %v1047
        %1118 = vmatpush.msra.mxu0 %v1040
        %1119 = vmatpush.msra.mxu0 %v1033
        %1120 = vmatmul.f32.gmra.mxu0 %v1077
        %v1121 = vpop.f32.mrf.mxu0
        %v1122 = vadd.f32 0.0, %v1121
        %1123 = vmatmul.f32.gmra.mxu0 %v1079
        %v1124 = vpop.f32.mrf.mxu0
        %v1125 = vadd.f32 0.0, %v1124
        %1126 = vdwg.mxu0
        %1127 = vmatpush.msra.mxu0 0.0
        %1128 = vmatpush.msra.mxu0 0.0
        %1129 = vmatpush.msra.mxu0 0.0
        %1130 = vmatpush.msra.mxu0 0.0
        %1131 = vmatpush.msra.mxu0 0.0
        %1132 = vmatpush.msra.mxu0 0.0
        %1133 = vmatpush.msra.mxu0 0.0
        %1134 = vmatpush.msra.mxu0 0.0
        %1135 = vmatpush.msra.mxu0 0.0
        %1136 = vmatpush.msra.mxu0 0.0
        %1137 = vmatpush.msra.mxu0 %v1069
        %1138 = vmatpush.msra.mxu0 %v1062
        %1139 = vmatpush.msra.mxu0 %v1055
        %1140 = vmatpush.msra.mxu0 %v1048
        %1141 = vmatpush.msra.mxu0 %v1041
        %1142 = vmatpush.msra.mxu0 %v1034
        %1143 = vmatmul.f32.gmra.mxu0 %v1077
        %v1144 = vpop.f32.mrf.mxu0
        %v1145 = vadd.f32 0.0, %v1144
        %1146 = vmatmul.f32.gmra.mxu0 %v1079
        %v1147 = vpop.f32.mrf.mxu0
        %v1148 = vadd.f32 0.0, %v1147
        %1149 = vdwg.mxu0
        %1150 = vmatpush.msra.mxu0 0.0
        %1151 = vmatpush.msra.mxu0 0.0
        %1152 = vmatpush.msra.mxu0 0.0
        %1153 = vmatpush.msra.mxu0 0.0
        %1154 = vmatpush.msra.mxu0 0.0
        %1155 = vmatpush.msra.mxu0 0.0
        %1156 = vmatpush.msra.mxu0 0.0
        %1157 = vmatpush.msra.mxu0 0.0
        %1158 = vmatpush.msra.mxu0 0.0
        %1159 = vmatpush.msra.mxu0 0.0
        %1160 = vmatpush.msra.mxu0 %v1070
        %1161 = vmatpush.msra.mxu0 %v1063
        %1162 = vmatpush.msra.mxu0 %v1056
        %1163 = vmatpush.msra.mxu0 %v1049
        %1164 = vmatpush.msra.mxu0 %v1042
        %1165 = vmatpush.msra.mxu0 %v1035
        %1166 = vmatmul.f32.gmra.mxu0 %v1077
        %v1167 = vpop.f32.mrf.mxu0
        %v1168 = vadd.f32 0.0, %v1167
        %1169 = vmatmul.f32.gmra.mxu0 %v1079
        %v1170 = vpop.f32.mrf.mxu0
        %v1171 = vadd.f32 0.0, %v1170
        %1172 = vdwg.mxu0
        %1173 = vmatpush.msra.mxu0 0.0
        %1174 = vmatpush.msra.mxu0 0.0
        %1175 = vmatpush.msra.mxu0 0.0
        %1176 = vmatpush.msra.mxu0 0.0
        %1177 = vmatpush.msra.mxu0 0.0
        %1178 = vmatpush.msra.mxu0 0.0
        %1179 = vmatpush.msra.mxu0 0.0
        %1180 = vmatpush.msra.mxu0 0.0
        %1181 = vmatpush.msra.mxu0 0.0
        %1182 = vmatpush.msra.mxu0 0.0
        %1183 = vmatpush.msra.mxu0 %v1071
        %1184 = vmatpush.msra.mxu0 %v1064
        %1185 = vmatpush.msra.mxu0 %v1057
        %1186 = vmatpush.msra.mxu0 %v1050
        %1187 = vmatpush.msra.mxu0 %v1043
        %1188 = vmatpush.msra.mxu0 %v1036
        %1189 = vmatmul.f32.gmra.mxu0 %v1077
        %v1190 = vpop.f32.mrf.mxu0
        %v1191 = vadd.f32 0.0, %v1190
        %1192 = vmatmul.f32.gmra.mxu0 %v1079
        %v1193 = vpop.f32.mrf.mxu0
        %v1194 = vadd.f32 0.0, %v1193
        %1195 = vdwg.mxu0
        %1196 = vmatpush.msra.mxu0 0.0
        %1197 = vmatpush.msra.mxu0 0.0
        %1198 = vmatpush.msra.mxu0 0.0
        %1199 = vmatpush.msra.mxu0 0.0
        %1200 = vmatpush.msra.mxu0 0.0
        %1201 = vmatpush.msra.mxu0 0.0
        %1202 = vmatpush.msra.mxu0 0.0
        %1203 = vmatpush.msra.mxu0 0.0
        %1204 = vmatpush.msra.mxu0 0.0
        %1205 = vmatpush.msra.mxu0 0.0
        %1206 = vmatpush.msra.mxu0 %v1072
        %1207 = vmatpush.msra.mxu0 %v1065
        %1208 = vmatpush.msra.mxu0 %v1058
        %1209 = vmatpush.msra.mxu0 %v1051
        %1210 = vmatpush.msra.mxu0 %v1044
        %1211 = vmatpush.msra.mxu0 %v1037
        %1212 = vmatmul.f32.gmra.mxu0 %v1077
        %v1213 = vpop.f32.mrf.mxu0
        %v1214 = vadd.f32 0.0, %v1213
        %1215 = vmatmul.f32.gmra.mxu0 %v1079
        %v1216 = vpop.f32.mrf.mxu0
        %v1217 = vadd.f32 0.0, %v1216
        %1218 = vdwg.mxu0
        %1219 = vmatpush.msra.mxu0 0.0
        %1220 = vmatpush.msra.mxu0 0.0
        %1221 = vmatpush.msra.mxu0 0.0
        %1222 = vmatpush.msra.mxu0 0.0
        %1223 = vmatpush.msra.mxu0 0.0
        %1224 = vmatpush.msra.mxu0 0.0
        %1225 = vmatpush.msra.mxu0 0.0
        %1226 = vmatpush.msra.mxu0 0.0
        %1227 = vmatpush.msra.mxu0 0.0
        %1228 = vmatpush.msra.mxu0 0.0
        %1229 = vmatpush.msra.mxu0 %v1073
        %1230 = vmatpush.msra.mxu0 %v1066
        %1231 = vmatpush.msra.mxu0 %v1059
        %1232 = vmatpush.msra.mxu0 %v1052
        %1233 = vmatpush.msra.mxu0 %v1045
        %1234 = vmatpush.msra.mxu0 %v1038
        %1235 = vmatmul.f32.gmra.mxu0 %v1077
        %v1236 = vpop.f32.mrf.mxu0
        %v1237 = vadd.f32 0.0, %v1236
        %1238 = vmatmul.f32.gmra.mxu0 %v1079
        %v1239 = vpop.f32.mrf.mxu0
        %v1240 = vadd.f32 0.0, %v1239
        %1241 = vdwg.mxu0
        %v1242 = vadd.f32 %v1017, %v1099
        %v1243 = vadd.f32 %v1018, %v1122
        %v1244 = vadd.f32 %v1019, %v1145
        %v1245 = vadd.f32 %v1020, %v1168
        %v1246 = vadd.f32 %v1021, %v1191
        %v1247 = vadd.f32 %v1022, %v1214
        %v1248 = vadd.f32 %v1023, %v1237
        %v1249 = vadd.f32 %v1024, %v1102
        %v1250 = vadd.f32 %v1025, %v1125
        %v1251 = vadd.f32 %v1026, %v1148
        %v1252 = vadd.f32 %v1027, %v1171
        %v1253 = vadd.f32 %v1028, %v1194
        %v1254 = vadd.f32 %v1029, %v1217
        %v1255 = vadd.f32 %v1030, %v1240
        %s1256 = scalar_lea.vmem %s1, 1680
        %v1257 = vld [vmem:[%s1256] sm:$0xff]
        %v1258 = vld [vmem:[%s1256 + $0x8] sm:$0xff]
        %v1259 = vld [vmem:[%s1256 + $0x10] sm:$0xff]
        %v1260 = vld [vmem:[%s1256 + $0x18] sm:$0xff]
        %v1261 = vld [vmem:[%s1256 + $0x20] sm:$0xff]
        %v1262 = vld [vmem:[%s1256 + $0x28] sm:$0xff]
        %v1263 = vld [vmem:[%s1256 + $0x30] sm:$0xff]
        %v1264 = vld [vmem:[%s1256 + $0x38] sm:$0xff]
        %v1265 = vld [vmem:[%s1256 + $0x40] sm:$0xff]
        %v1266 = vld [vmem:[%s1256 + $0x48] sm:$0xff]
        %v1267 = vld [vmem:[%s1256 + $0x50] sm:$0xff]
        %v1268 = vld [vmem:[%s1256 + $0x58] sm:$0xff]
        %v1269 = vld [vmem:[%s1256 + $0x60] sm:$0xff]
        %v1270 = vld [vmem:[%s1256 + $0x68] sm:$0xff]
        %v1271 = vld [vmem:[%s1256 + $0x70] sm:$0xff]
        %v1272 = vld [vmem:[%s1256 + $0x78] sm:$0xff]
        %v1273 = vld [vmem:[%s1256 + $0x80] sm:$0xff]
        %v1274 = vld [vmem:[%s1256 + $0x88] sm:$0xff]
        %v1275 = vld [vmem:[%s1256 + $0x90] sm:$0xff]
        %v1276 = vld [vmem:[%s1256 + $0x98] sm:$0xff]
        %v1277 = vld [vmem:[%s1256 + $0xa0] sm:$0xff]
        %v1278 = vld [vmem:[%s1256 + $0xa8] sm:$0xff]
        %v1279 = vld [vmem:[%s1256 + $0xb0] sm:$0xff]
        %v1280 = vld [vmem:[%s1256 + $0xb8] sm:$0xff]
        %v1281 = vld [vmem:[%s1256 + $0xc0] sm:$0xff]
        %v1282 = vld [vmem:[%s1256 + $0xc8] sm:$0xff]
        %v1283 = vld [vmem:[%s1256 + $0xd0] sm:$0xff]
        %v1284 = vld [vmem:[%s1256 + $0xd8] sm:$0xff]
        %v1285 = vld [vmem:[%s1256 + $0xe0] sm:$0xff]
        %v1286 = vld [vmem:[%s1256 + $0xe8] sm:$0xff]
        %v1287 = vld [vmem:[%s1256 + $0xf0] sm:$0xff]
        %v1288 = vld [vmem:[%s1256 + $0xf8] sm:$0xff]
        %v1289 = vld [vmem:[%s1256 + $0x100] sm:$0xff]
        %v1290 = vld [vmem:[%s1256 + $0x108] sm:$0xff]
        %v1291 = vld [vmem:[%s1256 + $0x110] sm:$0xff]
        %v1292 = vld [vmem:[%s1256 + $0x118] sm:$0xff]
        %v1293 = vld [vmem:[%s1256 + $0x120] sm:$0xff]
        %v1294 = vld [vmem:[%s1256 + $0x128] sm:$0xff]
        %v1295 = vld [vmem:[%s1256 + $0x130] sm:$0xff]
        %v1296 = vld [vmem:[%s1256 + $0x138] sm:$0xff]
        %v1297 = vld [vmem:[%s1256 + $0x140] sm:$0xff]
        %v1298 = vld [vmem:[%s1256 + $0x148] sm:$0xff]
        %v1299 = vrot.slane %v805, 2
        %v1300 = vrot.slane %v806, 2
        %v1301 = vsel %vm619, %v1299, %v1300
        %v1302 = vsel %vm245, %v1301, 0
        %v1304 = vsel %vm245, %v1300, 0
        %1306 = vmatpush.msra.mxu0 0.0
        %1307 = vmatpush.msra.mxu0 0.0
        %1308 = vmatpush.msra.mxu0 0.0
        %1309 = vmatpush.msra.mxu0 0.0
        %1310 = vmatpush.msra.mxu0 0.0
        %1311 = vmatpush.msra.mxu0 0.0
        %1312 = vmatpush.msra.mxu0 0.0
        %1313 = vmatpush.msra.mxu0 0.0
        %1314 = vmatpush.msra.mxu0 0.0
        %1315 = vmatpush.msra.mxu0 0.0
        %1316 = vmatpush.msra.mxu0 %v1292
        %1317 = vmatpush.msra.mxu0 %v1285
        %1318 = vmatpush.msra.mxu0 %v1278
        %1319 = vmatpush.msra.mxu0 %v1271
        %1320 = vmatpush.msra.mxu0 %v1264
        %1321 = vmatpush.msra.mxu0 %v1257
        %1322 = vmatmul.f32.gmra.mxu0 %v1302
        %v1323 = vpop.f32.mrf.mxu0
        %v1324 = vadd.f32 0.0, %v1323
        %1325 = vmatmul.f32.gmra.mxu0 %v1304
        %v1326 = vpop.f32.mrf.mxu0
        %v1327 = vadd.f32 0.0, %v1326
        %1328 = vdwg.mxu0
        %1329 = vmatpush.msra.mxu0 0.0
        %1330 = vmatpush.msra.mxu0 0.0
        %1331 = vmatpush.msra.mxu0 0.0
        %1332 = vmatpush.msra.mxu0 0.0
        %1333 = vmatpush.msra.mxu0 0.0
        %1334 = vmatpush.msra.mxu0 0.0
        %1335 = vmatpush.msra.mxu0 0.0
        %1336 = vmatpush.msra.mxu0 0.0
        %1337 = vmatpush.msra.mxu0 0.0
        %1338 = vmatpush.msra.mxu0 0.0
        %1339 = vmatpush.msra.mxu0 %v1293
        %1340 = vmatpush.msra.mxu0 %v1286
        %1341 = vmatpush.msra.mxu0 %v1279
        %1342 = vmatpush.msra.mxu0 %v1272
        %1343 = vmatpush.msra.mxu0 %v1265
        %1344 = vmatpush.msra.mxu0 %v1258
        %1345 = vmatmul.f32.gmra.mxu0 %v1302
        %v1346 = vpop.f32.mrf.mxu0
        %v1347 = vadd.f32 0.0, %v1346
        %1348 = vmatmul.f32.gmra.mxu0 %v1304
        %v1349 = vpop.f32.mrf.mxu0
        %v1350 = vadd.f32 0.0, %v1349
        %1351 = vdwg.mxu0
        %1352 = vmatpush.msra.mxu0 0.0
        %1353 = vmatpush.msra.mxu0 0.0
        %1354 = vmatpush.msra.mxu0 0.0
        %1355 = vmatpush.msra.mxu0 0.0
        %1356 = vmatpush.msra.mxu0 0.0
        %1357 = vmatpush.msra.mxu0 0.0
        %1358 = vmatpush.msra.mxu0 0.0
        %1359 = vmatpush.msra.mxu0 0.0
        %1360 = vmatpush.msra.mxu0 0.0
        %1361 = vmatpush.msra.mxu0 0.0
        %1362 = vmatpush.msra.mxu0 %v1294
        %1363 = vmatpush.msra.mxu0 %v1287
        %1364 = vmatpush.msra.mxu0 %v1280
        %1365 = vmatpush.msra.mxu0 %v1273
        %1366 = vmatpush.msra.mxu0 %v1266
        %1367 = vmatpush.msra.mxu0 %v1259
        %1368 = vmatmul.f32.gmra.mxu0 %v1302
        %v1369 = vpop.f32.mrf.mxu0
        %v1370 = vadd.f32 0.0, %v1369
        %1371 = vmatmul.f32.gmra.mxu0 %v1304
        %v1372 = vpop.f32.mrf.mxu0
        %v1373 = vadd.f32 0.0, %v1372
        %1374 = vdwg.mxu0
        %1375 = vmatpush.msra.mxu0 0.0
        %1376 = vmatpush.msra.mxu0 0.0
        %1377 = vmatpush.msra.mxu0 0.0
        %1378 = vmatpush.msra.mxu0 0.0
        %1379 = vmatpush.msra.mxu0 0.0
        %1380 = vmatpush.msra.mxu0 0.0
        %1381 = vmatpush.msra.mxu0 0.0
        %1382 = vmatpush.msra.mxu0 0.0
        %1383 = vmatpush.msra.mxu0 0.0
        %1384 = vmatpush.msra.mxu0 0.0
        %1385 = vmatpush.msra.mxu0 %v1295
        %1386 = vmatpush.msra.mxu0 %v1288
        %1387 = vmatpush.msra.mxu0 %v1281
        %1388 = vmatpush.msra.mxu0 %v1274
        %1389 = vmatpush.msra.mxu0 %v1267
        %1390 = vmatpush.msra.mxu0 %v1260
        %1391 = vmatmul.f32.gmra.mxu0 %v1302
        %v1392 = vpop.f32.mrf.mxu0
        %v1393 = vadd.f32 0.0, %v1392
        %1394 = vmatmul.f32.gmra.mxu0 %v1304
        %v1395 = vpop.f32.mrf.mxu0
        %v1396 = vadd.f32 0.0, %v1395
        %1397 = vdwg.mxu0
        %1398 = vmatpush.msra.mxu0 0.0
        %1399 = vmatpush.msra.mxu0 0.0
        %1400 = vmatpush.msra.mxu0 0.0
        %1401 = vmatpush.msra.mxu0 0.0
        %1402 = vmatpush.msra.mxu0 0.0
        %1403 = vmatpush.msra.mxu0 0.0
        %1404 = vmatpush.msra.mxu0 0.0
        %1405 = vmatpush.msra.mxu0 0.0
        %1406 = vmatpush.msra.mxu0 0.0
        %1407 = vmatpush.msra.mxu0 0.0
        %1408 = vmatpush.msra.mxu0 %v1296
        %1409 = vmatpush.msra.mxu0 %v1289
        %1410 = vmatpush.msra.mxu0 %v1282
        %1411 = vmatpush.msra.mxu0 %v1275
        %1412 = vmatpush.msra.mxu0 %v1268
        %1413 = vmatpush.msra.mxu0 %v1261
        %1414 = vmatmul.f32.gmra.mxu0 %v1302
        %v1415 = vpop.f32.mrf.mxu0
        %v1416 = vadd.f32 0.0, %v1415
        %1417 = vmatmul.f32.gmra.mxu0 %v1304
        %v1418 = vpop.f32.mrf.mxu0
        %v1419 = vadd.f32 0.0, %v1418
        %1420 = vdwg.mxu0
        %1421 = vmatpush.msra.mxu0 0.0
        %1422 = vmatpush.msra.mxu0 0.0
        %1423 = vmatpush.msra.mxu0 0.0
        %1424 = vmatpush.msra.mxu0 0.0
        %1425 = vmatpush.msra.mxu0 0.0
        %1426 = vmatpush.msra.mxu0 0.0
        %1427 = vmatpush.msra.mxu0 0.0
        %1428 = vmatpush.msra.mxu0 0.0
        %1429 = vmatpush.msra.mxu0 0.0
        %1430 = vmatpush.msra.mxu0 0.0
        %1431 = vmatpush.msra.mxu0 %v1297
        %1432 = vmatpush.msra.mxu0 %v1290
        %1433 = vmatpush.msra.mxu0 %v1283
        %1434 = vmatpush.msra.mxu0 %v1276
        %1435 = vmatpush.msra.mxu0 %v1269
        %1436 = vmatpush.msra.mxu0 %v1262
        %1437 = vmatmul.f32.gmra.mxu0 %v1302
        %v1438 = vpop.f32.mrf.mxu0
        %v1439 = vadd.f32 0.0, %v1438
        %1440 = vmatmul.f32.gmra.mxu0 %v1304
        %v1441 = vpop.f32.mrf.mxu0
        %v1442 = vadd.f32 0.0, %v1441
        %1443 = vdwg.mxu0
        %1444 = vmatpush.msra.mxu0 0.0
        %1445 = vmatpush.msra.mxu0 0.0
        %1446 = vmatpush.msra.mxu0 0.0
        %1447 = vmatpush.msra.mxu0 0.0
        %1448 = vmatpush.msra.mxu0 0.0
        %1449 = vmatpush.msra.mxu0 0.0
        %1450 = vmatpush.msra.mxu0 0.0
        %1451 = vmatpush.msra.mxu0 0.0
        %1452 = vmatpush.msra.mxu0 0.0
        %1453 = vmatpush.msra.mxu0 0.0
        %1454 = vmatpush.msra.mxu0 %v1298
        %1455 = vmatpush.msra.mxu0 %v1291
        %1456 = vmatpush.msra.mxu0 %v1284
        %1457 = vmatpush.msra.mxu0 %v1277
        %1458 = vmatpush.msra.mxu0 %v1270
        %1459 = vmatpush.msra.mxu0 %v1263
        %1460 = vmatmul.f32.gmra.mxu0 %v1302
        %v1461 = vpop.f32.mrf.mxu0
        %v1462 = vadd.f32 0.0, %v1461
        %1463 = vmatmul.f32.gmra.mxu0 %v1304
        %v1464 = vpop.f32.mrf.mxu0
        %v1465 = vadd.f32 0.0, %v1464
        %1466 = vdwg.mxu0
        %v1467 = vadd.f32 %v1242, %v1324
        %v1468 = vadd.f32 %v1243, %v1347
        %v1469 = vadd.f32 %v1244, %v1370
        %v1470 = vadd.f32 %v1245, %v1393
        %v1471 = vadd.f32 %v1246, %v1416
        %v1472 = vadd.f32 %v1247, %v1439
        %v1473 = vadd.f32 %v1248, %v1462
        %v1474 = vadd.f32 %v1249, %v1327
        %v1475 = vadd.f32 %v1250, %v1350
        %v1476 = vadd.f32 %v1251, %v1373
        %v1477 = vadd.f32 %v1252, %v1396
        %v1478 = vadd.f32 %v1253, %v1419
        %v1479 = vadd.f32 %v1254, %v1442
        %v1480 = vadd.f32 %v1255, %v1465
        %s1481 = sadd.s32 %s145, 2
        %s1482 = smul.u32 %s1481, 16
        %s1483 = scalar_lea.vmem %s138, %s1482
        %v1484 = vld [vmem:[%s1483] sm:$0xff]
        %v1485 = vld [vmem:[%s1483 + $0x8] sm:$0xff]
        %s1486 = scalar_lea.vmem %s1, 2016
        %v1487 = vld [vmem:[%s1486] sm:$0xff]
        %v1488 = vld [vmem:[%s1486 + $0x8] sm:$0xff]
        %v1489 = vld [vmem:[%s1486 + $0x10] sm:$0xff]
        %v1490 = vld [vmem:[%s1486 + $0x18] sm:$0xff]
        %v1491 = vld [vmem:[%s1486 + $0x20] sm:$0xff]
        %v1492 = vld [vmem:[%s1486 + $0x28] sm:$0xff]
        %v1493 = vld [vmem:[%s1486 + $0x30] sm:$0xff]
        %v1494 = vld [vmem:[%s1486 + $0x38] sm:$0xff]
        %v1495 = vld [vmem:[%s1486 + $0x40] sm:$0xff]
        %v1496 = vld [vmem:[%s1486 + $0x48] sm:$0xff]
        %v1497 = vld [vmem:[%s1486 + $0x50] sm:$0xff]
        %v1498 = vld [vmem:[%s1486 + $0x58] sm:$0xff]
        %v1499 = vld [vmem:[%s1486 + $0x60] sm:$0xff]
        %v1500 = vld [vmem:[%s1486 + $0x68] sm:$0xff]
        %v1501 = vld [vmem:[%s1486 + $0x70] sm:$0xff]
        %v1502 = vld [vmem:[%s1486 + $0x78] sm:$0xff]
        %v1503 = vld [vmem:[%s1486 + $0x80] sm:$0xff]
        %v1504 = vld [vmem:[%s1486 + $0x88] sm:$0xff]
        %v1505 = vld [vmem:[%s1486 + $0x90] sm:$0xff]
        %v1506 = vld [vmem:[%s1486 + $0x98] sm:$0xff]
        %v1507 = vld [vmem:[%s1486 + $0xa0] sm:$0xff]
        %v1508 = vld [vmem:[%s1486 + $0xa8] sm:$0xff]
        %v1509 = vld [vmem:[%s1486 + $0xb0] sm:$0xff]
        %v1510 = vld [vmem:[%s1486 + $0xb8] sm:$0xff]
        %v1511 = vld [vmem:[%s1486 + $0xc0] sm:$0xff]
        %v1512 = vld [vmem:[%s1486 + $0xc8] sm:$0xff]
        %v1513 = vld [vmem:[%s1486 + $0xd0] sm:$0xff]
        %v1514 = vld [vmem:[%s1486 + $0xd8] sm:$0xff]
        %v1515 = vld [vmem:[%s1486 + $0xe0] sm:$0xff]
        %v1516 = vld [vmem:[%s1486 + $0xe8] sm:$0xff]
        %v1517 = vld [vmem:[%s1486 + $0xf0] sm:$0xff]
        %v1518 = vld [vmem:[%s1486 + $0xf8] sm:$0xff]
        %v1519 = vld [vmem:[%s1486 + $0x100] sm:$0xff]
        %v1520 = vld [vmem:[%s1486 + $0x108] sm:$0xff]
        %v1521 = vld [vmem:[%s1486 + $0x110] sm:$0xff]
        %v1522 = vld [vmem:[%s1486 + $0x118] sm:$0xff]
        %v1523 = vld [vmem:[%s1486 + $0x120] sm:$0xff]
        %v1524 = vld [vmem:[%s1486 + $0x128] sm:$0xff]
        %v1525 = vld [vmem:[%s1486 + $0x130] sm:$0xff]
        %v1526 = vld [vmem:[%s1486 + $0x138] sm:$0xff]
        %v1527 = vld [vmem:[%s1486 + $0x140] sm:$0xff]
        %v1528 = vld [vmem:[%s1486 + $0x148] sm:$0xff]
        %v1530 = vsel %vm245, %v1484, 0
        %v1533 = vsel %vm245, %v1485, 0
        %1535 = vmatpush.msra.mxu0 0.0
        %1536 = vmatpush.msra.mxu0 0.0
        %1537 = vmatpush.msra.mxu0 0.0
        %1538 = vmatpush.msra.mxu0 0.0
        %1539 = vmatpush.msra.mxu0 0.0
        %1540 = vmatpush.msra.mxu0 0.0
        %1541 = vmatpush.msra.mxu0 0.0
        %1542 = vmatpush.msra.mxu0 0.0
        %1543 = vmatpush.msra.mxu0 0.0
        %1544 = vmatpush.msra.mxu0 0.0
        %1545 = vmatpush.msra.mxu0 %v1522
        %1546 = vmatpush.msra.mxu0 %v1515
        %1547 = vmatpush.msra.mxu0 %v1508
        %1548 = vmatpush.msra.mxu0 %v1501
        %1549 = vmatpush.msra.mxu0 %v1494
        %1550 = vmatpush.msra.mxu0 %v1487
        %1551 = vmatmul.f32.gmra.mxu0 %v1530
        %v1552 = vpop.f32.mrf.mxu0
        %v1553 = vadd.f32 0.0, %v1552
        %1554 = vmatmul.f32.gmra.mxu0 %v1533
        %v1555 = vpop.f32.mrf.mxu0
        %v1556 = vadd.f32 0.0, %v1555
        %1557 = vdwg.mxu0
        %1558 = vmatpush.msra.mxu0 0.0
        %1559 = vmatpush.msra.mxu0 0.0
        %1560 = vmatpush.msra.mxu0 0.0
        %1561 = vmatpush.msra.mxu0 0.0
        %1562 = vmatpush.msra.mxu0 0.0
        %1563 = vmatpush.msra.mxu0 0.0
        %1564 = vmatpush.msra.mxu0 0.0
        %1565 = vmatpush.msra.mxu0 0.0
        %1566 = vmatpush.msra.mxu0 0.0
        %1567 = vmatpush.msra.mxu0 0.0
        %1568 = vmatpush.msra.mxu0 %v1523
        %1569 = vmatpush.msra.mxu0 %v1516
        %1570 = vmatpush.msra.mxu0 %v1509
        %1571 = vmatpush.msra.mxu0 %v1502
        %1572 = vmatpush.msra.mxu0 %v1495
        %1573 = vmatpush.msra.mxu0 %v1488
        %1574 = vmatmul.f32.gmra.mxu0 %v1530
        %v1575 = vpop.f32.mrf.mxu0
        %v1576 = vadd.f32 0.0, %v1575
        %1577 = vmatmul.f32.gmra.mxu0 %v1533
        %v1578 = vpop.f32.mrf.mxu0
        %v1579 = vadd.f32 0.0, %v1578
        %1580 = vdwg.mxu0
        %1581 = vmatpush.msra.mxu0 0.0
        %1582 = vmatpush.msra.mxu0 0.0
        %1583 = vmatpush.msra.mxu0 0.0
        %1584 = vmatpush.msra.mxu0 0.0
        %1585 = vmatpush.msra.mxu0 0.0
        %1586 = vmatpush.msra.mxu0 0.0
        %1587 = vmatpush.msra.mxu0 0.0
        %1588 = vmatpush.msra.mxu0 0.0
        %1589 = vmatpush.msra.mxu0 0.0
        %1590 = vmatpush.msra.mxu0 0.0
        %1591 = vmatpush.msra.mxu0 %v1524
        %1592 = vmatpush.msra.mxu0 %v1517
        %1593 = vmatpush.msra.mxu0 %v1510
        %1594 = vmatpush.msra.mxu0 %v1503
        %1595 = vmatpush.msra.mxu0 %v1496
        %1596 = vmatpush.msra.mxu0 %v1489
        %1597 = vmatmul.f32.gmra.mxu0 %v1530
        %v1598 = vpop.f32.mrf.mxu0
        %v1599 = vadd.f32 0.0, %v1598
        %1600 = vmatmul.f32.gmra.mxu0 %v1533
        %v1601 = vpop.f32.mrf.mxu0
        %v1602 = vadd.f32 0.0, %v1601
        %1603 = vdwg.mxu0
        %1604 = vmatpush.msra.mxu0 0.0
        %1605 = vmatpush.msra.mxu0 0.0
        %1606 = vmatpush.msra.mxu0 0.0
        %1607 = vmatpush.msra.mxu0 0.0
        %1608 = vmatpush.msra.mxu0 0.0
        %1609 = vmatpush.msra.mxu0 0.0
        %1610 = vmatpush.msra.mxu0 0.0
        %1611 = vmatpush.msra.mxu0 0.0
        %1612 = vmatpush.msra.mxu0 0.0
        %1613 = vmatpush.msra.mxu0 0.0
        %1614 = vmatpush.msra.mxu0 %v1525
        %1615 = vmatpush.msra.mxu0 %v1518
        %1616 = vmatpush.msra.mxu0 %v1511
        %1617 = vmatpush.msra.mxu0 %v1504
        %1618 = vmatpush.msra.mxu0 %v1497
        %1619 = vmatpush.msra.mxu0 %v1490
        %1620 = vmatmul.f32.gmra.mxu0 %v1530
        %v1621 = vpop.f32.mrf.mxu0
        %v1622 = vadd.f32 0.0, %v1621
        %1623 = vmatmul.f32.gmra.mxu0 %v1533
        %v1624 = vpop.f32.mrf.mxu0
        %v1625 = vadd.f32 0.0, %v1624
        %1626 = vdwg.mxu0
        %1627 = vmatpush.msra.mxu0 0.0
        %1628 = vmatpush.msra.mxu0 0.0
        %1629 = vmatpush.msra.mxu0 0.0
        %1630 = vmatpush.msra.mxu0 0.0
        %1631 = vmatpush.msra.mxu0 0.0
        %1632 = vmatpush.msra.mxu0 0.0
        %1633 = vmatpush.msra.mxu0 0.0
        %1634 = vmatpush.msra.mxu0 0.0
        %1635 = vmatpush.msra.mxu0 0.0
        %1636 = vmatpush.msra.mxu0 0.0
        %1637 = vmatpush.msra.mxu0 %v1526
        %1638 = vmatpush.msra.mxu0 %v1519
        %1639 = vmatpush.msra.mxu0 %v1512
        %1640 = vmatpush.msra.mxu0 %v1505
        %1641 = vmatpush.msra.mxu0 %v1498
        %1642 = vmatpush.msra.mxu0 %v1491
        %1643 = vmatmul.f32.gmra.mxu0 %v1530
        %v1644 = vpop.f32.mrf.mxu0
        %v1645 = vadd.f32 0.0, %v1644
        %1646 = vmatmul.f32.gmra.mxu0 %v1533
        %v1647 = vpop.f32.mrf.mxu0
        %v1648 = vadd.f32 0.0, %v1647
        %1649 = vdwg.mxu0
        %1650 = vmatpush.msra.mxu0 0.0
        %1651 = vmatpush.msra.mxu0 0.0
        %1652 = vmatpush.msra.mxu0 0.0
        %1653 = vmatpush.msra.mxu0 0.0
        %1654 = vmatpush.msra.mxu0 0.0
        %1655 = vmatpush.msra.mxu0 0.0
        %1656 = vmatpush.msra.mxu0 0.0
        %1657 = vmatpush.msra.mxu0 0.0
        %1658 = vmatpush.msra.mxu0 0.0
        %1659 = vmatpush.msra.mxu0 0.0
        %1660 = vmatpush.msra.mxu0 %v1527
        %1661 = vmatpush.msra.mxu0 %v1520
        %1662 = vmatpush.msra.mxu0 %v1513
        %1663 = vmatpush.msra.mxu0 %v1506
        %1664 = vmatpush.msra.mxu0 %v1499
        %1665 = vmatpush.msra.mxu0 %v1492
        %1666 = vmatmul.f32.gmra.mxu0 %v1530
        %v1667 = vpop.f32.mrf.mxu0
        %v1668 = vadd.f32 0.0, %v1667
        %1669 = vmatmul.f32.gmra.mxu0 %v1533
        %v1670 = vpop.f32.mrf.mxu0
        %v1671 = vadd.f32 0.0, %v1670
        %1672 = vdwg.mxu0
        %1673 = vmatpush.msra.mxu0 0.0
        %1674 = vmatpush.msra.mxu0 0.0
        %1675 = vmatpush.msra.mxu0 0.0
        %1676 = vmatpush.msra.mxu0 0.0
        %1677 = vmatpush.msra.mxu0 0.0
        %1678 = vmatpush.msra.mxu0 0.0
        %1679 = vmatpush.msra.mxu0 0.0
        %1680 = vmatpush.msra.mxu0 0.0
        %1681 = vmatpush.msra.mxu0 0.0
        %1682 = vmatpush.msra.mxu0 0.0
        %1683 = vmatpush.msra.mxu0 %v1528
        %1684 = vmatpush.msra.mxu0 %v1521
        %1685 = vmatpush.msra.mxu0 %v1514
        %1686 = vmatpush.msra.mxu0 %v1507
        %1687 = vmatpush.msra.mxu0 %v1500
        %1688 = vmatpush.msra.mxu0 %v1493
        %1689 = vmatmul.f32.gmra.mxu0 %v1530
        %v1690 = vpop.f32.mrf.mxu0
        %v1691 = vadd.f32 0.0, %v1690
        %1692 = vmatmul.f32.gmra.mxu0 %v1533
        %v1693 = vpop.f32.mrf.mxu0
        %v1694 = vadd.f32 0.0, %v1693
        %1695 = vdwg.mxu0
        %v1696 = vadd.f32 %v1467, %v1553
        %v1697 = vadd.f32 %v1468, %v1576
        %v1698 = vadd.f32 %v1469, %v1599
        %v1699 = vadd.f32 %v1470, %v1622
        %v1700 = vadd.f32 %v1471, %v1645
        %v1701 = vadd.f32 %v1472, %v1668
        %v1702 = vadd.f32 %v1473, %v1691
        %v1703 = vadd.f32 %v1474, %v1556
        %v1704 = vadd.f32 %v1475, %v1579
        %v1705 = vadd.f32 %v1476, %v1602
        %v1706 = vadd.f32 %v1477, %v1625
        %v1707 = vadd.f32 %v1478, %v1648
        %v1708 = vadd.f32 %v1479, %v1671
        %v1709 = vadd.f32 %v1480, %v1694
        %s1710 = scalar_lea.vmem %s1, 2352
        %v1711 = vld [vmem:[%s1710] sm:$0xff]
        %v1712 = vld [vmem:[%s1710 + $0x8] sm:$0xff]
        %v1713 = vld [vmem:[%s1710 + $0x10] sm:$0xff]
        %v1714 = vld [vmem:[%s1710 + $0x18] sm:$0xff]
        %v1715 = vld [vmem:[%s1710 + $0x20] sm:$0xff]
        %v1716 = vld [vmem:[%s1710 + $0x28] sm:$0xff]
        %v1717 = vld [vmem:[%s1710 + $0x30] sm:$0xff]
        %v1718 = vld [vmem:[%s1710 + $0x38] sm:$0xff]
        %v1719 = vld [vmem:[%s1710 + $0x40] sm:$0xff]
        %v1720 = vld [vmem:[%s1710 + $0x48] sm:$0xff]
        %v1721 = vld [vmem:[%s1710 + $0x50] sm:$0xff]
        %v1722 = vld [vmem:[%s1710 + $0x58] sm:$0xff]
        %v1723 = vld [vmem:[%s1710 + $0x60] sm:$0xff]
        %v1724 = vld [vmem:[%s1710 + $0x68] sm:$0xff]
        %v1725 = vld [vmem:[%s1710 + $0x70] sm:$0xff]
        %v1726 = vld [vmem:[%s1710 + $0x78] sm:$0xff]
        %v1727 = vld [vmem:[%s1710 + $0x80] sm:$0xff]
        %v1728 = vld [vmem:[%s1710 + $0x88] sm:$0xff]
        %v1729 = vld [vmem:[%s1710 + $0x90] sm:$0xff]
        %v1730 = vld [vmem:[%s1710 + $0x98] sm:$0xff]
        %v1731 = vld [vmem:[%s1710 + $0xa0] sm:$0xff]
        %v1732 = vld [vmem:[%s1710 + $0xa8] sm:$0xff]
        %v1733 = vld [vmem:[%s1710 + $0xb0] sm:$0xff]
        %v1734 = vld [vmem:[%s1710 + $0xb8] sm:$0xff]
        %v1735 = vld [vmem:[%s1710 + $0xc0] sm:$0xff]
        %v1736 = vld [vmem:[%s1710 + $0xc8] sm:$0xff]
        %v1737 = vld [vmem:[%s1710 + $0xd0] sm:$0xff]
        %v1738 = vld [vmem:[%s1710 + $0xd8] sm:$0xff]
        %v1739 = vld [vmem:[%s1710 + $0xe0] sm:$0xff]
        %v1740 = vld [vmem:[%s1710 + $0xe8] sm:$0xff]
        %v1741 = vld [vmem:[%s1710 + $0xf0] sm:$0xff]
        %v1742 = vld [vmem:[%s1710 + $0xf8] sm:$0xff]
        %v1743 = vld [vmem:[%s1710 + $0x100] sm:$0xff]
        %v1744 = vld [vmem:[%s1710 + $0x108] sm:$0xff]
        %v1745 = vld [vmem:[%s1710 + $0x110] sm:$0xff]
        %v1746 = vld [vmem:[%s1710 + $0x118] sm:$0xff]
        %v1747 = vld [vmem:[%s1710 + $0x120] sm:$0xff]
        %v1748 = vld [vmem:[%s1710 + $0x128] sm:$0xff]
        %v1749 = vld [vmem:[%s1710 + $0x130] sm:$0xff]
        %v1750 = vld [vmem:[%s1710 + $0x138] sm:$0xff]
        %v1751 = vld [vmem:[%s1710 + $0x140] sm:$0xff]
        %v1752 = vld [vmem:[%s1710 + $0x148] sm:$0xff]
        %v1753 = vrot.slane %v1484, 1
        %v1754 = vrot.slane %v1485, 1
        %v1755 = vsel %vm241, %v1753, %v1754
        %v1756 = vsel %vm245, %v1755, 0
        %v1758 = vsel %vm245, %v1754, 0
        %1760 = vmatpush.msra.mxu0 0.0
        %1761 = vmatpush.msra.mxu0 0.0
        %1762 = vmatpush.msra.mxu0 0.0
        %1763 = vmatpush.msra.mxu0 0.0
        %1764 = vmatpush.msra.mxu0 0.0
        %1765 = vmatpush.msra.mxu0 0.0
        %1766 = vmatpush.msra.mxu0 0.0
        %1767 = vmatpush.msra.mxu0 0.0
        %1768 = vmatpush.msra.mxu0 0.0
        %1769 = vmatpush.msra.mxu0 0.0
        %1770 = vmatpush.msra.mxu0 %v1746
        %1771 = vmatpush.msra.mxu0 %v1739
        %1772 = vmatpush.msra.mxu0 %v1732
        %1773 = vmatpush.msra.mxu0 %v1725
        %1774 = vmatpush.msra.mxu0 %v1718
        %1775 = vmatpush.msra.mxu0 %v1711
        %1776 = vmatmul.f32.gmra.mxu0 %v1756
        %v1777 = vpop.f32.mrf.mxu0
        %v1778 = vadd.f32 0.0, %v1777
        %1779 = vmatmul.f32.gmra.mxu0 %v1758
        %v1780 = vpop.f32.mrf.mxu0
        %v1781 = vadd.f32 0.0, %v1780
        %1782 = vdwg.mxu0
        %1783 = vmatpush.msra.mxu0 0.0
        %1784 = vmatpush.msra.mxu0 0.0
        %1785 = vmatpush.msra.mxu0 0.0
        %1786 = vmatpush.msra.mxu0 0.0
        %1787 = vmatpush.msra.mxu0 0.0
        %1788 = vmatpush.msra.mxu0 0.0
        %1789 = vmatpush.msra.mxu0 0.0
        %1790 = vmatpush.msra.mxu0 0.0
        %1791 = vmatpush.msra.mxu0 0.0
        %1792 = vmatpush.msra.mxu0 0.0
        %1793 = vmatpush.msra.mxu0 %v1747
        %1794 = vmatpush.msra.mxu0 %v1740
        %1795 = vmatpush.msra.mxu0 %v1733
        %1796 = vmatpush.msra.mxu0 %v1726
        %1797 = vmatpush.msra.mxu0 %v1719
        %1798 = vmatpush.msra.mxu0 %v1712
        %1799 = vmatmul.f32.gmra.mxu0 %v1756
        %v1800 = vpop.f32.mrf.mxu0
        %v1801 = vadd.f32 0.0, %v1800
        %1802 = vmatmul.f32.gmra.mxu0 %v1758
        %v1803 = vpop.f32.mrf.mxu0
        %v1804 = vadd.f32 0.0, %v1803
        %1805 = vdwg.mxu0
        %1806 = vmatpush.msra.mxu0 0.0
        %1807 = vmatpush.msra.mxu0 0.0
        %1808 = vmatpush.msra.mxu0 0.0
        %1809 = vmatpush.msra.mxu0 0.0
        %1810 = vmatpush.msra.mxu0 0.0
        %1811 = vmatpush.msra.mxu0 0.0
        %1812 = vmatpush.msra.mxu0 0.0
        %1813 = vmatpush.msra.mxu0 0.0
        %1814 = vmatpush.msra.mxu0 0.0
        %1815 = vmatpush.msra.mxu0 0.0
        %1816 = vmatpush.msra.mxu0 %v1748
        %1817 = vmatpush.msra.mxu0 %v1741
        %1818 = vmatpush.msra.mxu0 %v1734
        %1819 = vmatpush.msra.mxu0 %v1727
        %1820 = vmatpush.msra.mxu0 %v1720
        %1821 = vmatpush.msra.mxu0 %v1713
        %1822 = vmatmul.f32.gmra.mxu0 %v1756
        %v1823 = vpop.f32.mrf.mxu0
        %v1824 = vadd.f32 0.0, %v1823
        %1825 = vmatmul.f32.gmra.mxu0 %v1758
        %v1826 = vpop.f32.mrf.mxu0
        %v1827 = vadd.f32 0.0, %v1826
        %1828 = vdwg.mxu0
        %1829 = vmatpush.msra.mxu0 0.0
        %1830 = vmatpush.msra.mxu0 0.0
        %1831 = vmatpush.msra.mxu0 0.0
        %1832 = vmatpush.msra.mxu0 0.0
        %1833 = vmatpush.msra.mxu0 0.0
        %1834 = vmatpush.msra.mxu0 0.0
        %1835 = vmatpush.msra.mxu0 0.0
        %1836 = vmatpush.msra.mxu0 0.0
        %1837 = vmatpush.msra.mxu0 0.0
        %1838 = vmatpush.msra.mxu0 0.0
        %1839 = vmatpush.msra.mxu0 %v1749
        %1840 = vmatpush.msra.mxu0 %v1742
        %1841 = vmatpush.msra.mxu0 %v1735
        %1842 = vmatpush.msra.mxu0 %v1728
        %1843 = vmatpush.msra.mxu0 %v1721
        %1844 = vmatpush.msra.mxu0 %v1714
        %1845 = vmatmul.f32.gmra.mxu0 %v1756
        %v1846 = vpop.f32.mrf.mxu0
        %v1847 = vadd.f32 0.0, %v1846
        %1848 = vmatmul.f32.gmra.mxu0 %v1758
        %v1849 = vpop.f32.mrf.mxu0
        %v1850 = vadd.f32 0.0, %v1849
        %1851 = vdwg.mxu0
        %1852 = vmatpush.msra.mxu0 0.0
        %1853 = vmatpush.msra.mxu0 0.0
        %1854 = vmatpush.msra.mxu0 0.0
        %1855 = vmatpush.msra.mxu0 0.0
        %1856 = vmatpush.msra.mxu0 0.0
        %1857 = vmatpush.msra.mxu0 0.0
        %1858 = vmatpush.msra.mxu0 0.0
        %1859 = vmatpush.msra.mxu0 0.0
        %1860 = vmatpush.msra.mxu0 0.0
        %1861 = vmatpush.msra.mxu0 0.0
        %1862 = vmatpush.msra.mxu0 %v1750
        %1863 = vmatpush.msra.mxu0 %v1743
        %1864 = vmatpush.msra.mxu0 %v1736
        %1865 = vmatpush.msra.mxu0 %v1729
        %1866 = vmatpush.msra.mxu0 %v1722
        %1867 = vmatpush.msra.mxu0 %v1715
        %1868 = vmatmul.f32.gmra.mxu0 %v1756
        %v1869 = vpop.f32.mrf.mxu0
        %v1870 = vadd.f32 0.0, %v1869
        %1871 = vmatmul.f32.gmra.mxu0 %v1758
        %v1872 = vpop.f32.mrf.mxu0
        %v1873 = vadd.f32 0.0, %v1872
        %1874 = vdwg.mxu0
        %1875 = vmatpush.msra.mxu0 0.0
        %1876 = vmatpush.msra.mxu0 0.0
        %1877 = vmatpush.msra.mxu0 0.0
        %1878 = vmatpush.msra.mxu0 0.0
        %1879 = vmatpush.msra.mxu0 0.0
        %1880 = vmatpush.msra.mxu0 0.0
        %1881 = vmatpush.msra.mxu0 0.0
        %1882 = vmatpush.msra.mxu0 0.0
        %1883 = vmatpush.msra.mxu0 0.0
        %1884 = vmatpush.msra.mxu0 0.0
        %1885 = vmatpush.msra.mxu0 %v1751
        %1886 = vmatpush.msra.mxu0 %v1744
        %1887 = vmatpush.msra.mxu0 %v1737
        %1888 = vmatpush.msra.mxu0 %v1730
        %1889 = vmatpush.msra.mxu0 %v1723
        %1890 = vmatpush.msra.mxu0 %v1716
        %1891 = vmatmul.f32.gmra.mxu0 %v1756
        %v1892 = vpop.f32.mrf.mxu0
        %v1893 = vadd.f32 0.0, %v1892
        %1894 = vmatmul.f32.gmra.mxu0 %v1758
        %v1895 = vpop.f32.mrf.mxu0
        %v1896 = vadd.f32 0.0, %v1895
        %1897 = vdwg.mxu0
        %1898 = vmatpush.msra.mxu0 0.0
        %1899 = vmatpush.msra.mxu0 0.0
        %1900 = vmatpush.msra.mxu0 0.0
        %1901 = vmatpush.msra.mxu0 0.0
        %1902 = vmatpush.msra.mxu0 0.0
        %1903 = vmatpush.msra.mxu0 0.0
        %1904 = vmatpush.msra.mxu0 0.0
        %1905 = vmatpush.msra.mxu0 0.0
        %1906 = vmatpush.msra.mxu0 0.0
        %1907 = vmatpush.msra.mxu0 0.0
        %1908 = vmatpush.msra.mxu0 %v1752
        %1909 = vmatpush.msra.mxu0 %v1745
        %1910 = vmatpush.msra.mxu0 %v1738
        %1911 = vmatpush.msra.mxu0 %v1731
        %1912 = vmatpush.msra.mxu0 %v1724
        %1913 = vmatpush.msra.mxu0 %v1717
        %1914 = vmatmul.f32.gmra.mxu0 %v1756
        %v1915 = vpop.f32.mrf.mxu0
        %v1916 = vadd.f32 0.0, %v1915
        %1917 = vmatmul.f32.gmra.mxu0 %v1758
        %v1918 = vpop.f32.mrf.mxu0
        %v1919 = vadd.f32 0.0, %v1918
        %1920 = vdwg.mxu0
        %v1921 = vadd.f32 %v1696, %v1778
        %v1922 = vadd.f32 %v1697, %v1801
        %v1923 = vadd.f32 %v1698, %v1824
        %v1924 = vadd.f32 %v1699, %v1847
        %v1925 = vadd.f32 %v1700, %v1870
        %v1926 = vadd.f32 %v1701, %v1893
        %v1927 = vadd.f32 %v1702, %v1916
        %v1928 = vadd.f32 %v1703, %v1781
        %v1929 = vadd.f32 %v1704, %v1804
        %v1930 = vadd.f32 %v1705, %v1827
        %v1931 = vadd.f32 %v1706, %v1850
        %v1932 = vadd.f32 %v1707, %v1873
        %v1933 = vadd.f32 %v1708, %v1896
        %v1934 = vadd.f32 %v1709, %v1919
        %s1935 = scalar_lea.vmem %s1, 2688
        %v1936 = vld [vmem:[%s1935] sm:$0xff]
        %v1937 = vld [vmem:[%s1935 + $0x8] sm:$0xff]
        %v1938 = vld [vmem:[%s1935 + $0x10] sm:$0xff]
        %v1939 = vld [vmem:[%s1935 + $0x18] sm:$0xff]
        %v1940 = vld [vmem:[%s1935 + $0x20] sm:$0xff]
        %v1941 = vld [vmem:[%s1935 + $0x28] sm:$0xff]
        %v1942 = vld [vmem:[%s1935 + $0x30] sm:$0xff]
        %v1943 = vld [vmem:[%s1935 + $0x38] sm:$0xff]
        %v1944 = vld [vmem:[%s1935 + $0x40] sm:$0xff]
        %v1945 = vld [vmem:[%s1935 + $0x48] sm:$0xff]
        %v1946 = vld [vmem:[%s1935 + $0x50] sm:$0xff]
        %v1947 = vld [vmem:[%s1935 + $0x58] sm:$0xff]
        %v1948 = vld [vmem:[%s1935 + $0x60] sm:$0xff]
        %v1949 = vld [vmem:[%s1935 + $0x68] sm:$0xff]
        %v1950 = vld [vmem:[%s1935 + $0x70] sm:$0xff]
        %v1951 = vld [vmem:[%s1935 + $0x78] sm:$0xff]
        %v1952 = vld [vmem:[%s1935 + $0x80] sm:$0xff]
        %v1953 = vld [vmem:[%s1935 + $0x88] sm:$0xff]
        %v1954 = vld [vmem:[%s1935 + $0x90] sm:$0xff]
        %v1955 = vld [vmem:[%s1935 + $0x98] sm:$0xff]
        %v1956 = vld [vmem:[%s1935 + $0xa0] sm:$0xff]
        %v1957 = vld [vmem:[%s1935 + $0xa8] sm:$0xff]
        %v1958 = vld [vmem:[%s1935 + $0xb0] sm:$0xff]
        %v1959 = vld [vmem:[%s1935 + $0xb8] sm:$0xff]
        %v1960 = vld [vmem:[%s1935 + $0xc0] sm:$0xff]
        %v1961 = vld [vmem:[%s1935 + $0xc8] sm:$0xff]
        %v1962 = vld [vmem:[%s1935 + $0xd0] sm:$0xff]
        %v1963 = vld [vmem:[%s1935 + $0xd8] sm:$0xff]
        %v1964 = vld [vmem:[%s1935 + $0xe0] sm:$0xff]
        %v1965 = vld [vmem:[%s1935 + $0xe8] sm:$0xff]
        %v1966 = vld [vmem:[%s1935 + $0xf0] sm:$0xff]
        %v1967 = vld [vmem:[%s1935 + $0xf8] sm:$0xff]
        %v1968 = vld [vmem:[%s1935 + $0x100] sm:$0xff]
        %v1969 = vld [vmem:[%s1935 + $0x108] sm:$0xff]
        %v1970 = vld [vmem:[%s1935 + $0x110] sm:$0xff]
        %v1971 = vld [vmem:[%s1935 + $0x118] sm:$0xff]
        %v1972 = vld [vmem:[%s1935 + $0x120] sm:$0xff]
        %v1973 = vld [vmem:[%s1935 + $0x128] sm:$0xff]
        %v1974 = vld [vmem:[%s1935 + $0x130] sm:$0xff]
        %v1975 = vld [vmem:[%s1935 + $0x138] sm:$0xff]
        %v1976 = vld [vmem:[%s1935 + $0x140] sm:$0xff]
        %v1977 = vld [vmem:[%s1935 + $0x148] sm:$0xff]
        %v1978 = vrot.slane %v1484, 2
        %v1979 = vrot.slane %v1485, 2
        %v1980 = vsel %vm619, %v1978, %v1979
        %v1981 = vsel %vm245, %v1980, 0
        %v1983 = vsel %vm245, %v1979, 0
        %1985 = vmatpush.msra.mxu0 0.0
        %1986 = vmatpush.msra.mxu0 0.0
        %1987 = vmatpush.msra.mxu0 0.0
        %1988 = vmatpush.msra.mxu0 0.0
        %1989 = vmatpush.msra.mxu0 0.0
        %1990 = vmatpush.msra.mxu0 0.0
        %1991 = vmatpush.msra.mxu0 0.0
        %1992 = vmatpush.msra.mxu0 0.0
        %1993 = vmatpush.msra.mxu0 0.0
        %1994 = vmatpush.msra.mxu0 0.0
        %1995 = vmatpush.msra.mxu0 %v1971
        %1996 = vmatpush.msra.mxu0 %v1964
        %1997 = vmatpush.msra.mxu0 %v1957
        %1998 = vmatpush.msra.mxu0 %v1950
        %1999 = vmatpush.msra.mxu0 %v1943
        %2000 = vmatpush.msra.mxu0 %v1936
        %2001 = vmatmul.f32.gmra.mxu0 %v1981
        %v2002 = vpop.f32.mrf.mxu0
        %v2003 = vadd.f32 0.0, %v2002
        %2004 = vmatmul.f32.gmra.mxu0 %v1983
        %v2005 = vpop.f32.mrf.mxu0
        %v2006 = vadd.f32 0.0, %v2005
        %2007 = vdwg.mxu0
        %2008 = vmatpush.msra.mxu0 0.0
        %2009 = vmatpush.msra.mxu0 0.0
        %2010 = vmatpush.msra.mxu0 0.0
        %2011 = vmatpush.msra.mxu0 0.0
        %2012 = vmatpush.msra.mxu0 0.0
        %2013 = vmatpush.msra.mxu0 0.0
        %2014 = vmatpush.msra.mxu0 0.0
        %2015 = vmatpush.msra.mxu0 0.0
        %2016 = vmatpush.msra.mxu0 0.0
        %2017 = vmatpush.msra.mxu0 0.0
        %2018 = vmatpush.msra.mxu0 %v1972
        %2019 = vmatpush.msra.mxu0 %v1965
        %2020 = vmatpush.msra.mxu0 %v1958
        %2021 = vmatpush.msra.mxu0 %v1951
        %2022 = vmatpush.msra.mxu0 %v1944
        %2023 = vmatpush.msra.mxu0 %v1937
        %2024 = vmatmul.f32.gmra.mxu0 %v1981
        %v2025 = vpop.f32.mrf.mxu0
        %v2026 = vadd.f32 0.0, %v2025
        %2027 = vmatmul.f32.gmra.mxu0 %v1983
        %v2028 = vpop.f32.mrf.mxu0
        %v2029 = vadd.f32 0.0, %v2028
        %2030 = vdwg.mxu0
        %2031 = vmatpush.msra.mxu0 0.0
        %2032 = vmatpush.msra.mxu0 0.0
        %2033 = vmatpush.msra.mxu0 0.0
        %2034 = vmatpush.msra.mxu0 0.0
        %2035 = vmatpush.msra.mxu0 0.0
        %2036 = vmatpush.msra.mxu0 0.0
        %2037 = vmatpush.msra.mxu0 0.0
        %2038 = vmatpush.msra.mxu0 0.0
        %2039 = vmatpush.msra.mxu0 0.0
        %2040 = vmatpush.msra.mxu0 0.0
        %2041 = vmatpush.msra.mxu0 %v1973
        %2042 = vmatpush.msra.mxu0 %v1966
        %2043 = vmatpush.msra.mxu0 %v1959
        %2044 = vmatpush.msra.mxu0 %v1952
        %2045 = vmatpush.msra.mxu0 %v1945
        %2046 = vmatpush.msra.mxu0 %v1938
        %2047 = vmatmul.f32.gmra.mxu0 %v1981
        %v2048 = vpop.f32.mrf.mxu0
        %v2049 = vadd.f32 0.0, %v2048
        %2050 = vmatmul.f32.gmra.mxu0 %v1983
        %v2051 = vpop.f32.mrf.mxu0
        %v2052 = vadd.f32 0.0, %v2051
        %2053 = vdwg.mxu0
        %2054 = vmatpush.msra.mxu0 0.0
        %2055 = vmatpush.msra.mxu0 0.0
        %2056 = vmatpush.msra.mxu0 0.0
        %2057 = vmatpush.msra.mxu0 0.0
        %2058 = vmatpush.msra.mxu0 0.0
        %2059 = vmatpush.msra.mxu0 0.0
        %2060 = vmatpush.msra.mxu0 0.0
        %2061 = vmatpush.msra.mxu0 0.0
        %2062 = vmatpush.msra.mxu0 0.0
        %2063 = vmatpush.msra.mxu0 0.0
        %2064 = vmatpush.msra.mxu0 %v1974
        %2065 = vmatpush.msra.mxu0 %v1967
        %2066 = vmatpush.msra.mxu0 %v1960
        %2067 = vmatpush.msra.mxu0 %v1953
        %2068 = vmatpush.msra.mxu0 %v1946
        %2069 = vmatpush.msra.mxu0 %v1939
        %2070 = vmatmul.f32.gmra.mxu0 %v1981
        %v2071 = vpop.f32.mrf.mxu0
        %v2072 = vadd.f32 0.0, %v2071
        %2073 = vmatmul.f32.gmra.mxu0 %v1983
        %v2074 = vpop.f32.mrf.mxu0
        %v2075 = vadd.f32 0.0, %v2074
        %2076 = vdwg.mxu0
        %2077 = vmatpush.msra.mxu0 0.0
        %2078 = vmatpush.msra.mxu0 0.0
        %2079 = vmatpush.msra.mxu0 0.0
        %2080 = vmatpush.msra.mxu0 0.0
        %2081 = vmatpush.msra.mxu0 0.0
        %2082 = vmatpush.msra.mxu0 0.0
        %2083 = vmatpush.msra.mxu0 0.0
        %2084 = vmatpush.msra.mxu0 0.0
        %2085 = vmatpush.msra.mxu0 0.0
        %2086 = vmatpush.msra.mxu0 0.0
        %2087 = vmatpush.msra.mxu0 %v1975
        %2088 = vmatpush.msra.mxu0 %v1968
        %2089 = vmatpush.msra.mxu0 %v1961
        %2090 = vmatpush.msra.mxu0 %v1954
        %2091 = vmatpush.msra.mxu0 %v1947
        %2092 = vmatpush.msra.mxu0 %v1940
        %2093 = vmatmul.f32.gmra.mxu0 %v1981
        %v2094 = vpop.f32.mrf.mxu0
        %v2095 = vadd.f32 0.0, %v2094
        %2096 = vmatmul.f32.gmra.mxu0 %v1983
        %v2097 = vpop.f32.mrf.mxu0
        %v2098 = vadd.f32 0.0, %v2097
        %2099 = vdwg.mxu0
        %2100 = vmatpush.msra.mxu0 0.0
        %2101 = vmatpush.msra.mxu0 0.0
        %2102 = vmatpush.msra.mxu0 0.0
        %2103 = vmatpush.msra.mxu0 0.0
        %2104 = vmatpush.msra.mxu0 0.0
        %2105 = vmatpush.msra.mxu0 0.0
        %2106 = vmatpush.msra.mxu0 0.0
        %2107 = vmatpush.msra.mxu0 0.0
        %2108 = vmatpush.msra.mxu0 0.0
        %2109 = vmatpush.msra.mxu0 0.0
        %2110 = vmatpush.msra.mxu0 %v1976
        %2111 = vmatpush.msra.mxu0 %v1969
        %2112 = vmatpush.msra.mxu0 %v1962
        %2113 = vmatpush.msra.mxu0 %v1955
        %2114 = vmatpush.msra.mxu0 %v1948
        %2115 = vmatpush.msra.mxu0 %v1941
        %2116 = vmatmul.f32.gmra.mxu0 %v1981
        %v2117 = vpop.f32.mrf.mxu0
        %v2118 = vadd.f32 0.0, %v2117
        %2119 = vmatmul.f32.gmra.mxu0 %v1983
        %v2120 = vpop.f32.mrf.mxu0
        %v2121 = vadd.f32 0.0, %v2120
        %2122 = vdwg.mxu0
        %2123 = vmatpush.msra.mxu0 0.0
        %2124 = vmatpush.msra.mxu0 0.0
        %2125 = vmatpush.msra.mxu0 0.0
        %2126 = vmatpush.msra.mxu0 0.0
        %2127 = vmatpush.msra.mxu0 0.0
        %2128 = vmatpush.msra.mxu0 0.0
        %2129 = vmatpush.msra.mxu0 0.0
        %2130 = vmatpush.msra.mxu0 0.0
        %2131 = vmatpush.msra.mxu0 0.0
        %2132 = vmatpush.msra.mxu0 0.0
        %2133 = vmatpush.msra.mxu0 %v1977
        %2134 = vmatpush.msra.mxu0 %v1970
        %2135 = vmatpush.msra.mxu0 %v1963
        %2136 = vmatpush.msra.mxu0 %v1956
        %2137 = vmatpush.msra.mxu0 %v1949
        %2138 = vmatpush.msra.mxu0 %v1942
        %2139 = vmatmul.f32.gmra.mxu0 %v1981
        %v2140 = vpop.f32.mrf.mxu0
        %v2141 = vadd.f32 0.0, %v2140
        %2142 = vmatmul.f32.gmra.mxu0 %v1983
        %v2143 = vpop.f32.mrf.mxu0
        %v2144 = vadd.f32 0.0, %v2143
        %2145 = vdwg.mxu0
        %v2146 = vadd.f32 %v1921, %v2003
        %v2147 = vadd.f32 %v1922, %v2026
        %v2148 = vadd.f32 %v1923, %v2049
        %v2149 = vadd.f32 %v1924, %v2072
        %v2150 = vadd.f32 %v1925, %v2095
        %v2151 = vadd.f32 %v1926, %v2118
        %v2152 = vadd.f32 %v1927, %v2141
        %v2153 = vadd.f32 %v1928, %v2006
        %v2154 = vadd.f32 %v1929, %v2029
        %v2155 = vadd.f32 %v1930, %v2052
        %v2156 = vadd.f32 %v1931, %v2075
        %v2157 = vadd.f32 %v1932, %v2098
        %v2158 = vadd.f32 %v1933, %v2121
        %v2159 = vadd.f32 %v1934, %v2144
        %s2160 = smul.u32 %s145, 14
        %s2161 = smul.addr %s2160, 8
        %s2162 = scalar_lea.vmem %s143, %s2161
        %2163 = vst [vmem:[%s2162] sm:$0xff] %v2146
        %2164 = vst [vmem:[%s2162 + $0x8] sm:$0xff] %v2147
        %2165 = vst [vmem:[%s2162 + $0x10] sm:$0xff] %v2148
        %2166 = vst [vmem:[%s2162 + $0x18] sm:$0xff] %v2149
        %2167 = vst [vmem:[%s2162 + $0x20] sm:$0xff] %v2150
        %2168 = vst [vmem:[%s2162 + $0x28] sm:$0xff] %v2151
        %2169 = vst [vmem:[%s2162 + $0x30] sm:$0xff] %v2152
        %2170 = vst [vmem:[%s2162 + $0x38] sm:$0x3f] %v2153
        %2171 = vst [vmem:[%s2162 + $0x40] sm:$0x3f] %v2154
        %2172 = vst [vmem:[%s2162 + $0x48] sm:$0x3f] %v2155
        %2173 = vst [vmem:[%s2162 + $0x50] sm:$0x3f] %v2156
        %2174 = vst [vmem:[%s2162 + $0x58] sm:$0x3f] %v2157
        %2175 = vst [vmem:[%s2162 + $0x60] sm:$0x3f] %v2158
        %2176 = vst [vmem:[%s2162 + $0x68] sm:$0x3f] %v2159
      $region33: #{conv3d_pallas.1} parent=27 // loop_footer
        %s149 = sadd.s32 1, %s145
      $region34: #{conv3d_pallas.1} parent=27 // loop_footer_branch
        %144 = sbr.rel target = $region30
      $region35: #{conv3d_pallas.1} parent=27 // loop_exit
        _
      %p2177 = scmp.lt.s32.totalorder %s13, 1
      %s2178 = scalar_select %p2177, %s13, 1
      %s2179 = smul.addr %s2178, 196
      %s2180 = smul.addr %s2179, 8
      %s2181 = scalar_lea.vmem %s2, %s2180
      // Predicated region
      $region36: #{conv3d_pallas.1} parent=27 // pred_check
        %p2182 = pneg %p78
      $region37: #{conv3d_pallas.1} parent=27 // pred_check_branch
        %2184 = sbr.rel (%p2182) target = $region39
      $region38: #{conv3d_pallas.1} parent=27 // pred_region
        _
      $region39: #{conv3d_pallas.1} parent=27 // pred_fallthru
        _
    $region28: #{conv3d_pallas.1} parent=5 // pred_fallthru
      _
    %p2185 = scmp.le.s32.totalorder 2, %s8
    // Predicated region
    $region40: #{conv3d_pallas.1} parent=5 // pred_check
      %p2186 = pneg %p2185
    $region41: #{conv3d_pallas.1} parent=5 // pred_check_branch
      %2188 = sbr.rel (%p2186) target = $region43
    $region42: #{conv3d_pallas.1} parent=5 // pred_region
      %s2189 = ssub.s32 %s8, 2
      // Predicated region
      $region44: #{conv3d_pallas.1} parent=42 // pred_check
        %p2190 = pneg %p84
      $region45: #{conv3d_pallas.1} parent=42 // pred_check_branch
        %2192 = sbr.rel (%p2190) target = $region47
      $region46: #{conv3d_pallas.1} parent=42 // pred_region
        %p2193 = scmp.lt.s32.totalorder %s14, 1
        %s2194 = scalar_select %p2193, %s14, 1
        %s2195 = smul.addr %s2194, 196
        %s2196 = smul.addr %s2195, 8
        %s2197 = scalar_lea.vmem %s2, %s2196
      $region47: #{conv3d_pallas.1} parent=42 // pred_fallthru
        _
    $region43: #{conv3d_pallas.1} parent=5 // pred_fallthru
      _
  $region6: #{conv3d_pallas.1} parent=0 // loop_footer
    %s12 = sadd.s32 1, %s8
  $region7: #{conv3d_pallas.1} parent=0 // loop_footer_branch
    %7 = sbr.rel target = $region3
  $region8: #{conv3d_pallas.1} parent=0 // loop_exit
    _

</llo_original>
